<compile_context>
chip_gen: v7x
topology: tpu7x:2x2x1
jax: 0.10.0
libtpu: 0.0.40
codegen_flags: <defaults>
</compile_context>

<pallas_src>
import math
import functools

import jax
import jax.numpy as jnp
from jax import lax
from jax.experimental import pallas as pl
from jax.experimental.pallas import tpu as pltpu


def _mha_kernel(xq_ref, xf_ref, wq_ref, bq_ref, wkv_ref, bkv_ref, wo_ref, bo_ref,
                *out_refs, num_heads, head_size, collect_probs):
    if collect_probs:
        out_ref, probs_ref = out_refs
    else:
        (out_ref,) = out_refs
        probs_ref = None

    N, D = num_heads, head_size
    H = N * D
    cdt = xq_ref.dtype            # native compute dtype for MXU matmuls

    xq = xq_ref[0]                # (tq, H)  query rows of this tile
    xf = xf_ref[0]                # (S,  H)  all rows (for K/V)

    # All-heads projections; native-dtype MXU matmuls with f32 accumulation.
    # (1/sqrt(D) is already folded into wq/bq by the wrapper.)
    q = (jnp.dot(xq, wq_ref[...], preferred_element_type=jnp.float32)
         + bq_ref[...].astype(jnp.float32))                        # (tq, H) f32
    kv = (jnp.dot(xf, wkv_ref[...], preferred_element_type=jnp.float32)
          + bkv_ref[...].astype(jnp.float32))                      # (S, 2H) f32

    q = q.astype(cdt)
    k = kv[:, :H].astype(cdt)     # lane-aligned split at column H
    v = kv[:, H:].astype(cdt)

    ctx_cols = []
    for n in range(N):            # in-kernel head loop (static unroll)
        lo, hi = n * D, (n + 1) * D
        qn, kn, vn = q[:, lo:hi], k[:, lo:hi], v[:, lo:hi]
        # scores = q_n @ k_n^T without an explicit transpose.
        s = lax.dot_general(qn, kn, (((1,), (1,)), ((), ())),
                            preferred_element_type=jnp.float32)    # (tq, S)
        m = jnp.max(s, axis=-1, keepdims=True)
        e = jnp.exp(s - m)
        # Exact reciprocal when the probs are returned (match PyTorch softmax);
        # approximate EUP reciprocal (essentially free) otherwise.
        p = e * pl.reciprocal(jnp.sum(e, axis=-1, keepdims=True),
                              approx=not collect_probs)
        if collect_probs:
            probs_ref[0, n] = p.astype(probs_ref.dtype)
        ctx_cols.append(jnp.dot(p.astype(cdt), vn,
                                preferred_element_type=jnp.float32))
    ctx = jnp.concatenate(ctx_cols, axis=-1).astype(cdt)           # (tq, N*D)

    # Single output projection over all heads: contraction depth K = H.
    out = (jnp.dot(ctx, wo_ref[...], preferred_element_type=jnp.float32)
           + bo_ref[...].astype(jnp.float32))
    out_ref[0] = out.astype(out_ref.dtype)


def _pick_query_tile(seq_len):
    # Tile queries only when it divides cleanly (keeps (8,128) block rules happy);
    # ViT-length sequences (e.g. 197) simply use the full sequence as one tile.
    for tq in (512, 256, 128):
        if seq_len % tq == 0:
            return tq
    return seq_len


@functools.partial(jax.jit, static_argnames=("output_attentions",))
def multi_head_attention(x, wq, wk, wv, bq, bk, bv, wo, bo, *,
                         output_attentions=False):
    """x: (B,S,H); wq/wk/wv: (N,D,H); bq/bk/bv: (N,D); wo: (H,N*D); bo: (1,H)."""
    B, S, H = x.shape
    N, D, _ = wq.shape
    tq = _pick_query_tile(S)
    n_q = S // tq

    # ---- One-time weight repacking (hoisted out of the kernel) ----------------
    scale = 1.0 / math.sqrt(D)
    # Packed so the kernel does plain x @ W:  wq_p[:, n*D + d] = wq[n, d, :].
    wq_p = (jnp.transpose(wq, (2, 0, 1)).reshape(H, N * D) * scale).astype(x.dtype)
    bq_p = (bq.reshape(1, N * D) * scale).astype(x.dtype)
    wk_p = jnp.transpose(wk, (2, 0, 1)).reshape(H, N * D)
    wv_p = jnp.transpose(wv, (2, 0, 1)).reshape(H, N * D)
    wkv_p = jnp.concatenate([wk_p, wv_p], axis=1).astype(x.dtype)       # (H, 2H)
    bkv_p = jnp.concatenate([bk.reshape(1, -1), bv.reshape(1, -1)],
                            axis=1).astype(x.dtype)                     # (1, 2H)
    wo_t = jnp.transpose(wo).astype(x.dtype)                            # (N*D, H)
    bo_p = bo.astype(x.dtype)                                           # (1, H)

    itemsize = jnp.dtype(x.dtype).itemsize
    flops = B * (2 * S * H * H                 # Q projection (all heads)
                 + n_q * 2 * S * H * (2 * H)   # K/V projection (per q-tile)
                 + 4 * N * S * S * D           # scores + probs @ v
                 + 2 * S * H * H)              # output projection
    weight_bytes = (wq_p.size + bq_p.size + wkv_p.size + bkv_p.size
                    + wo_t.size + bo_p.size) * itemsize                 # once: resident
    bytes_accessed = (2 * x.size + B * S * H) * itemsize + weight_bytes
    if output_attentions:
        bytes_accessed += B * N * S * S * itemsize
    cost = pl.CostEstimate(flops=int(flops),
                           transcendentals=int(B * N * S * S),
                           bytes_accessed=int(bytes_accessed))

    out_shapes = [jax.ShapeDtypeStruct((B, S, H), x.dtype)]
    out_specs = [pl.BlockSpec((1, tq, H), lambda b, qi: (b, qi, 0))]
    if output_attentions:
        # Probs in the input dtype (matches the PyTorch module's output dtype).
        out_shapes.append(jax.ShapeDtypeStruct((B, N, S, S), x.dtype))
        out_specs.append(pl.BlockSpec((1, N, tq, S), lambda b, qi: (b, 0, qi, 0)))

    # Weights/biases: full-array blocks, constant index -> fetched once, kept
    # resident in VMEM across the whole grid (no per-batch re-DMA).
    const = lambda b, qi: (0, 0)

    kernel = functools.partial(_mha_kernel, num_heads=N, head_size=D,
                               collect_probs=output_attentions)

    results = pl.pallas_call(
        kernel,
        out_shape=tuple(out_shapes),
        grid=(B, n_q),
        in_specs=[
            pl.BlockSpec((1, tq, H), lambda b, qi: (b, qi, 0)),   # x (query rows)
            pl.BlockSpec((1, S, H), lambda b, qi: (b, 0, 0)),     # x (key/value rows)
            pl.BlockSpec((H, N * D), const),                      # packed Q weight (scaled)
            pl.BlockSpec((1, N * D), const),                      # packed Q bias (scaled)
            pl.BlockSpec((H, 2 * N * D), const),                  # packed K|V weight
            pl.BlockSpec((1, 2 * N * D), const),                  # packed K|V bias
            pl.BlockSpec((N * D, H), const),                      # out-proj weight (pre-T)
            pl.BlockSpec((1, H), const),                          # out-proj bias
        ],
        out_specs=tuple(out_specs),
        compiler_params=pltpu.CompilerParams(
            dimension_semantics=("parallel", "parallel"),
            # Above the 16/32 MiB scoped defaults, headroom under v7x's 64 MiB.
            vmem_limit_bytes=48 * 1024 * 1024,
        ),
        cost_estimate=cost,
    )(x, x, wq_p, bq_p, wkv_p, bkv_p, wo_t, bo_p)

    if output_attentions:
        out, probs = results
        return out, probs
    (out,) = results
    return out, None


def _reference(x, wq, wk, wv, bq, bk, bv, wo, bo):
    # Pure-JAX reference of the PyTorch forward (dropout in eval mode).
    q = jnp.einsum('bsh,ndh->bnsd', x, wq) + bq[None, :, None, :]
    k = jnp.einsum('bsh,ndh->bnsd', x, wk) + bk[None, :, None, :]
    v = jnp.einsum('bsh,ndh->bnsd', x, wv) + bv[None, :, None, :]
    D = q.shape[-1]
    scores = jnp.einsum('bnsd,bntd->bnst', q, k) / math.sqrt(D)
    probs = jax.nn.softmax(scores, axis=-1)
    ctx = jnp.einsum('bnst,bntd->bnsd', probs, v)
    B, N, S, _ = ctx.shape
    concat = jnp.transpose(ctx, (0, 2, 1, 3)).reshape(B, S, N * D)
    out = jnp.einsum('bsa,ha->bsh', concat, wo) + bo[0]
    return out, probs


if __name__ == "__main__":
    # Small ViT-ish config
    B, S = 2, 8
    hidden = 32
    num_heads = 4
    head_size = hidden // num_heads  # 8

    key = jax.random.PRNGKey(0)
    ks = jax.random.split(key, 9)
    x = jax.random.normal(ks[0], (B, S, hidden), dtype=jnp.float32)
    wq = jax.random.normal(ks[1], (num_heads, head_size, hidden), dtype=jnp.float32) * 0.05
    wk = jax.random.normal(ks[2], (num_heads, head_size, hidden), dtype=jnp.float32) * 0.05
    wv = jax.random.normal(ks[3], (num_heads, head_size, hidden), dtype=jnp.float32) * 0.05
    bq = jax.random.normal(ks[4], (num_heads, head_size), dtype=jnp.float32) * 0.05
    bk = jax.random.normal(ks[5], (num_heads, head_size), dtype=jnp.float32) * 0.05
    bv = jax.random.normal(ks[6], (num_heads, head_size), dtype=jnp.float32) * 0.05
    wo = jax.random.normal(ks[7], (hidden, num_heads * head_size), dtype=jnp.float32) * 0.05
    bo = jax.random.normal(ks[8], (1, hidden), dtype=jnp.float32) * 0.05

    ref_out, ref_probs = _reference(x, wq, wk, wv, bq, bk, bv, wo, bo)

    # f32 path, attention probs requested (output_attentions=True).
    out, probs = multi_head_attention(x, wq, wk, wv, bq, bk, bv, wo, bo,
                                      output_attentions=True)
    out, probs = jax.block_until_ready((out, probs))
    assert jnp.allclose(out, ref_out, atol=2e-3, rtol=2e-3), "output mismatch"
    assert jnp.allclose(probs.astype(jnp.float32), ref_probs,
                        atol=2e-3, rtol=2e-3), "probs mismatch"

    # Default path: no attention-probs output (approx softmax reciprocal allowed).
    out2, probs2 = multi_head_attention(x, wq, wk, wv, bq, bk, bv, wo, bo)
    out2 = jax.block_until_ready(out2)
    assert probs2 is None
    assert jnp.allclose(out2, ref_out, atol=2e-3, rtol=2e-3), "output mismatch (no-probs path)"

    # bf16 operands (bf16 MXU matmuls with f32 accumulation) smoke test.
    bf = jnp.bfloat16
    out_bf, _ = multi_head_attention(
        x.astype(bf), wq.astype(bf), wk.astype(bf), wv.astype(bf),
        bq.astype(bf), bk.astype(bf), bv.astype(bf), wo.astype(bf), bo.astype(bf))
    out_bf = jax.block_until_ready(out_bf)
    assert jnp.allclose(out_bf.astype(jnp.float32), ref_out, atol=5e-2, rtol=5e-2), \
        "bf16 output mismatch"

    print("KERNEL_OK")
</pallas_src>

<mosaic_0001>
module attributes {stable_mosaic.version = 11 : i64} {
  func.func @_mha_kernel(%arg0: i32, %arg1: i32, %arg2: memref<1x8x32xf32, #tpu.memory_space<vmem>>, %arg3: memref<1x8x32xf32, #tpu.memory_space<vmem>>, %arg4: memref<32x32xf32, #tpu.memory_space<vmem>>, %arg5: memref<1x32xf32, #tpu.memory_space<vmem>>, %arg6: memref<32x64xf32, #tpu.memory_space<vmem>>, %arg7: memref<1x64xf32, #tpu.memory_space<vmem>>, %arg8: memref<32x32xf32, #tpu.memory_space<vmem>>, %arg9: memref<1x32xf32, #tpu.memory_space<vmem>>, %arg10: memref<1x8x32xf32, #tpu.memory_space<vmem>>, %arg11: memref<1x4x8x8xf32, #tpu.memory_space<vmem>>) attributes {dimension_semantics = [#tpu.dimension_semantics<parallel>, #tpu.dimension_semantics<parallel>], iteration_bounds = array<i64: 2, 1>, scalar_prefetch = 0 : i64, scratch_operands = 0 : i64, tpu.core_type = #tpu.core_type<tc>, window_params = [{transform_indices = @transform_0, window_bounds = array<i64: 1, 8, 32>}, {transform_indices = @transform_1, window_bounds = array<i64: 1, 8, 32>}, {pipeline_mode = #tpu.pipeline_mode<synchronous>, transform_indices = @transform_2, window_bounds = array<i64: 32, 32>}, {pipeline_mode = #tpu.pipeline_mode<synchronous>, transform_indices = @transform_3, window_bounds = array<i64: 1, 32>}, {pipeline_mode = #tpu.pipeline_mode<synchronous>, transform_indices = @transform_4, window_bounds = array<i64: 32, 64>}, {pipeline_mode = #tpu.pipeline_mode<synchronous>, transform_indices = @transform_5, window_bounds = array<i64: 1, 64>}, {pipeline_mode = #tpu.pipeline_mode<synchronous>, transform_indices = @transform_6, window_bounds = array<i64: 32, 32>}, {pipeline_mode = #tpu.pipeline_mode<synchronous>, transform_indices = @transform_7, window_bounds = array<i64: 1, 32>}, {transform_indices = @transform_8, window_bounds = array<i64: 1, 8, 32>}, {transform_indices = @transform_9, window_bounds = array<i64: 1, 4, 8, 8>}]} {
    %c0 = arith.constant 0 : index
    %c0_0 = arith.constant 0 : index
    %c0_1 = arith.constant 0 : index
    %0 = vector.load %arg2[%c0, %c0_0, %c0_1] : memref<1x8x32xf32, #tpu.memory_space<vmem>>, vector<1x8x32xf32>
    %1 = vector.shape_cast %0 : vector<1x8x32xf32> to vector<8x32xf32>
    %c0_2 = arith.constant 0 : index
    %c0_3 = arith.constant 0 : index
    %c0_4 = arith.constant 0 : index
    %2 = vector.load %arg3[%c0_2, %c0_3, %c0_4] : memref<1x8x32xf32, #tpu.memory_space<vmem>>, vector<1x8x32xf32>
    %3 = vector.shape_cast %2 : vector<1x8x32xf32> to vector<8x32xf32>
    %c0_5 = arith.constant 0 : index
    %c0_6 = arith.constant 0 : index
    %4 = vector.load %arg4[%c0_5, %c0_6] : memref<32x32xf32, #tpu.memory_space<vmem>>, vector<32x32xf32>
    %cst = arith.constant dense<0.000000e+00> : vector<8x32xf32>
    %5 = tpu.matmul %1, %4, %cst {dimension_numbers = #tpu.dot_dimension_numbers<[1], [0], [0], [1], [0, 0, 1, 1], [], []>} : vector<8x32xf32>, vector<32x32xf32>, vector<8x32xf32> -> vector<8x32xf32>
    %c0_7 = arith.constant 0 : index
    %c0_8 = arith.constant 0 : index
    %6 = vector.load %arg5[%c0_7, %c0_8] : memref<1x32xf32, #tpu.memory_space<vmem>>, vector<1x32xf32>
    %7 = vector.broadcast %6 : vector<1x32xf32> to vector<8x32xf32>
    %8 = arith.addf %5, %7 : vector<8x32xf32>
    %c0_9 = arith.constant 0 : index
    %c0_10 = arith.constant 0 : index
    %9 = vector.load %arg6[%c0_9, %c0_10] : memref<32x64xf32, #tpu.memory_space<vmem>>, vector<32x64xf32>
    %cst_11 = arith.constant dense<0.000000e+00> : vector<8x64xf32>
    %10 = tpu.matmul %3, %9, %cst_11 {dimension_numbers = #tpu.dot_dimension_numbers<[1], [0], [0], [1], [0, 0, 1, 1], [], []>} : vector<8x32xf32>, vector<32x64xf32>, vector<8x64xf32> -> vector<8x64xf32>
    %c0_12 = arith.constant 0 : index
    %c0_13 = arith.constant 0 : index
    %11 = vector.load %arg7[%c0_12, %c0_13] : memref<1x64xf32, #tpu.memory_space<vmem>>, vector<1x64xf32>
    %12 = vector.broadcast %11 : vector<1x64xf32> to vector<8x64xf32>
    %13 = arith.addf %10, %12 : vector<8x64xf32>
    %14 = vector.extract_strided_slice %13 {offsets = [0, 0], sizes = [8, 32], strides = [1, 1]} : vector<8x64xf32> to vector<8x32xf32>
    %15 = vector.extract_strided_slice %13 {offsets = [0, 32], sizes = [8, 32], strides = [1, 1]} : vector<8x64xf32> to vector<8x32xf32>
    %16 = vector.extract_strided_slice %8 {offsets = [0, 0], sizes = [8, 8], strides = [1, 1]} : vector<8x32xf32> to vector<8x8xf32>
    %17 = vector.extract_strided_slice %14 {offsets = [0, 0], sizes = [8, 8], strides = [1, 1]} : vector<8x32xf32> to vector<8x8xf32>
    %18 = vector.extract_strided_slice %15 {offsets = [0, 0], sizes = [8, 8], strides = [1, 1]} : vector<8x32xf32> to vector<8x8xf32>
    %cst_14 = arith.constant dense<0.000000e+00> : vector<8x8xf32>
    %19 = tpu.matmul %16, %17, %cst_14 {dimension_numbers = #tpu.dot_dimension_numbers<[1], [1], [0], [0], [0, 0, 1, 0], [], []>} : vector<8x8xf32>, vector<8x8xf32>, vector<8x8xf32> -> vector<8x8xf32>
    %cst_15 = arith.constant dense<0xFF800000> : vector<8xf32>
    %20 = vector.multi_reduction <maximumf>, %19, %cst_15 [1] : vector<8x8xf32> to vector<8xf32>
    %21 = vector.shape_cast %20 : vector<8xf32> to vector<8x1xf32>
    %22 = vector.broadcast %21 : vector<8x1xf32> to vector<8x8xf32>
    %23 = arith.subf %19, %22 : vector<8x8xf32>
    %24 = math.exp %23 : vector<8x8xf32>
    %cst_16 = arith.constant dense<0.000000e+00> : vector<8xf32>
    %25 = vector.multi_reduction <add>, %24, %cst_16 [1] : vector<8x8xf32> to vector<8xf32>
    %26 = vector.shape_cast %25 : vector<8xf32> to vector<8x1xf32>
    %27 = tpu.reciprocal %26 : vector<8x1xf32> -> vector<8x1xf32>
    %28 = vector.broadcast %27 : vector<8x1xf32> to vector<8x8xf32>
    %29 = arith.mulf %24, %28 : vector<8x8xf32>
    %c0_17 = arith.constant 0 : index
    %c0_18 = arith.constant 0 : index
    %c0_19 = arith.constant 0 : index
    %c0_20 = arith.constant 0 : index
    %30 = vector.load %arg11[%c0_17, %c0_18, %c0_19, %c0_20] : memref<1x4x8x8xf32, #tpu.memory_space<vmem>>, vector<1x1x8x8xf32>
    %31 = vector.shape_cast %30 : vector<1x1x8x8xf32> to vector<8x8xf32>
    %32 = vector.shape_cast %29 : vector<8x8xf32> to vector<1x1x8x8xf32>
    tpu.vector_store %arg11[%c0_17, %c0_18, %c0_19, %c0_20], %32 {strides = array<i32>} : memref<1x4x8x8xf32, #tpu.memory_space<vmem>>, vector<1x1x8x8xf32>,
    %cst_21 = arith.constant dense<0.000000e+00> : vector<8x8xf32>
    %33 = tpu.matmul %29, %18, %cst_21 {dimension_numbers = #tpu.dot_dimension_numbers<[1], [0], [0], [1], [0, 0, 1, 1], [], []>} : vector<8x8xf32>, vector<8x8xf32>, vector<8x8xf32> -> vector<8x8xf32>
    %34 = vector.extract_strided_slice %8 {offsets = [0, 8], sizes = [8, 8], strides = [1, 1]} : vector<8x32xf32> to vector<8x8xf32>
    %35 = vector.extract_strided_slice %14 {offsets = [0, 8], sizes = [8, 8], strides = [1, 1]} : vector<8x32xf32> to vector<8x8xf32>
    %36 = vector.extract_strided_slice %15 {offsets = [0, 8], sizes = [8, 8], strides = [1, 1]} : vector<8x32xf32> to vector<8x8xf32>
    %cst_22 = arith.constant dense<0.000000e+00> : vector<8x8xf32>
    %37 = tpu.matmul %34, %35, %cst_22 {dimension_numbers = #tpu.dot_dimension_numbers<[1], [1], [0], [0], [0, 0, 1, 0], [], []>} : vector<8x8xf32>, vector<8x8xf32>, vector<8x8xf32> -> vector<8x8xf32>
    %cst_23 = arith.constant dense<0xFF800000> : vector<8xf32>
    %38 = vector.multi_reduction <maximumf>, %37, %cst_23 [1] : vector<8x8xf32> to vector<8xf32>
    %39 = vector.shape_cast %38 : vector<8xf32> to vector<8x1xf32>
    %40 = vector.broadcast %39 : vector<8x1xf32> to vector<8x8xf32>
    %41 = arith.subf %37, %40 : vector<8x8xf32>
    %42 = math.exp %41 : vector<8x8xf32>
    %cst_24 = arith.constant dense<0.000000e+00> : vector<8xf32>
    %43 = vector.multi_reduction <add>, %42, %cst_24 [1] : vector<8x8xf32> to vector<8xf32>
    %44 = vector.shape_cast %43 : vector<8xf32> to vector<8x1xf32>
    %45 = tpu.reciprocal %44 : vector<8x1xf32> -> vector<8x1xf32>
    %46 = vector.broadcast %45 : vector<8x1xf32> to vector<8x8xf32>
    %47 = arith.mulf %42, %46 : vector<8x8xf32>
    %c0_25 = arith.constant 0 : index
    %c1 = arith.constant 1 : index
    %c0_26 = arith.constant 0 : index
    %c0_27 = arith.constant 0 : index
    %48 = vector.load %arg11[%c0_25, %c1, %c0_26, %c0_27] : memref<1x4x8x8xf32, #tpu.memory_space<vmem>>, vector<1x1x8x8xf32>
    %49 = vector.shape_cast %48 : vector<1x1x8x8xf32> to vector<8x8xf32>
    %50 = vector.shape_cast %47 : vector<8x8xf32> to vector<1x1x8x8xf32>
    tpu.vector_store %arg11[%c0_25, %c1, %c0_26, %c0_27], %50 {strides = array<i32>} : memref<1x4x8x8xf32, #tpu.memory_space<vmem>>, vector<1x1x8x8xf32>,
    %cst_28 = arith.constant dense<0.000000e+00> : vector<8x8xf32>
    %51 = tpu.matmul %47, %36, %cst_28 {dimension_numbers = #tpu.dot_dimension_numbers<[1], [0], [0], [1], [0, 0, 1, 1], [], []>} : vector<8x8xf32>, vector<8x8xf32>, vector<8x8xf32> -> vector<8x8xf32>
    %52 = vector.extract_strided_slice %8 {offsets = [0, 16], sizes = [8, 8], strides = [1, 1]} : vector<8x32xf32> to vector<8x8xf32>
    %53 = vector.extract_strided_slice %14 {offsets = [0, 16], sizes = [8, 8], strides = [1, 1]} : vector<8x32xf32> to vector<8x8xf32>
    %54 = vector.extract_strided_slice %15 {offsets = [0, 16], sizes = [8, 8], strides = [1, 1]} : vector<8x32xf32> to vector<8x8xf32>
    %cst_29 = arith.constant dense<0.000000e+00> : vector<8x8xf32>
    %55 = tpu.matmul %52, %53, %cst_29 {dimension_numbers = #tpu.dot_dimension_numbers<[1], [1], [0], [0], [0, 0, 1, 0], [], []>} : vector<8x8xf32>, vector<8x8xf32>, vector<8x8xf32> -> vector<8x8xf32>
    %cst_30 = arith.constant dense<0xFF800000> : vector<8xf32>
    %56 = vector.multi_reduction <maximumf>, %55, %cst_30 [1] : vector<8x8xf32> to vector<8xf32>
    %57 = vector.shape_cast %56 : vector<8xf32> to vector<8x1xf32>
    %58 = vector.broadcast %57 : vector<8x1xf32> to vector<8x8xf32>
    %59 = arith.subf %55, %58 : vector<8x8xf32>
    %60 = math.exp %59 : vector<8x8xf32>
    %cst_31 = arith.constant dense<0.000000e+00> : vector<8xf32>
    %61 = vector.multi_reduction <add>, %60, %cst_31 [1] : vector<8x8xf32> to vector<8xf32>
    %62 = vector.shape_cast %61 : vector<8xf32> to vector<8x1xf32>
    %63 = tpu.reciprocal %62 : vector<8x1xf32> -> vector<8x1xf32>
    %64 = vector.broadcast %63 : vector<8x1xf32> to vector<8x8xf32>
    %65 = arith.mulf %60, %64 : vector<8x8xf32>
    %c0_32 = arith.constant 0 : index
    %c2 = arith.constant 2 : index
    %c0_33 = arith.constant 0 : index
    %c0_34 = arith.constant 0 : index
    %66 = vector.load %arg11[%c0_32, %c2, %c0_33, %c0_34] : memref<1x4x8x8xf32, #tpu.memory_space<vmem>>, vector<1x1x8x8xf32>
    %67 = vector.shape_cast %66 : vector<1x1x8x8xf32> to vector<8x8xf32>
    %68 = vector.shape_cast %65 : vector<8x8xf32> to vector<1x1x8x8xf32>
    tpu.vector_store %arg11[%c0_32, %c2, %c0_33, %c0_34], %68 {strides = array<i32>} : memref<1x4x8x8xf32, #tpu.memory_space<vmem>>, vector<1x1x8x8xf32>,
    %cst_35 = arith.constant dense<0.000000e+00> : vector<8x8xf32>
    %69 = tpu.matmul %65, %54, %cst_35 {dimension_numbers = #tpu.dot_dimension_numbers<[1], [0], [0], [1], [0, 0, 1, 1], [], []>} : vector<8x8xf32>, vector<8x8xf32>, vector<8x8xf32> -> vector<8x8xf32>
    %70 = vector.extract_strided_slice %8 {offsets = [0, 24], sizes = [8, 8], strides = [1, 1]} : vector<8x32xf32> to vector<8x8xf32>
    %71 = vector.extract_strided_slice %14 {offsets = [0, 24], sizes = [8, 8], strides = [1, 1]} : vector<8x32xf32> to vector<8x8xf32>
    %72 = vector.extract_strided_slice %15 {offsets = [0, 24], sizes = [8, 8], strides = [1, 1]} : vector<8x32xf32> to vector<8x8xf32>
    %cst_36 = arith.constant dense<0.000000e+00> : vector<8x8xf32>
    %73 = tpu.matmul %70, %71, %cst_36 {dimension_numbers = #tpu.dot_dimension_numbers<[1], [1], [0], [0], [0, 0, 1, 0], [], []>} : vector<8x8xf32>, vector<8x8xf32>, vector<8x8xf32> -> vector<8x8xf32>
    %cst_37 = arith.constant dense<0xFF800000> : vector<8xf32>
    %74 = vector.multi_reduction <maximumf>, %73, %cst_37 [1] : vector<8x8xf32> to vector<8xf32>
    %75 = vector.shape_cast %74 : vector<8xf32> to vector<8x1xf32>
    %76 = vector.broadcast %75 : vector<8x1xf32> to vector<8x8xf32>
    %77 = arith.subf %73, %76 : vector<8x8xf32>
    %78 = math.exp %77 : vector<8x8xf32>
    %cst_38 = arith.constant dense<0.000000e+00> : vector<8xf32>
    %79 = vector.multi_reduction <add>, %78, %cst_38 [1] : vector<8x8xf32> to vector<8xf32>
    %80 = vector.shape_cast %79 : vector<8xf32> to vector<8x1xf32>
    %81 = tpu.reciprocal %80 : vector<8x1xf32> -> vector<8x1xf32>
    %82 = vector.broadcast %81 : vector<8x1xf32> to vector<8x8xf32>
    %83 = arith.mulf %78, %82 : vector<8x8xf32>
    %c0_39 = arith.constant 0 : index
    %c3 = arith.constant 3 : index
    %c0_40 = arith.constant 0 : index
    %c0_41 = arith.constant 0 : index
    %84 = vector.load %arg11[%c0_39, %c3, %c0_40, %c0_41] : memref<1x4x8x8xf32, #tpu.memory_space<vmem>>, vector<1x1x8x8xf32>
    %85 = vector.shape_cast %84 : vector<1x1x8x8xf32> to vector<8x8xf32>
    %86 = vector.shape_cast %83 : vector<8x8xf32> to vector<1x1x8x8xf32>
    tpu.vector_store %arg11[%c0_39, %c3, %c0_40, %c0_41], %86 {strides = array<i32>} : memref<1x4x8x8xf32, #tpu.memory_space<vmem>>, vector<1x1x8x8xf32>,
    %cst_42 = arith.constant dense<0.000000e+00> : vector<8x8xf32>
    %87 = tpu.matmul %83, %72, %cst_42 {dimension_numbers = #tpu.dot_dimension_numbers<[1], [0], [0], [1], [0, 0, 1, 1], [], []>} : vector<8x8xf32>, vector<8x8xf32>, vector<8x8xf32> -> vector<8x8xf32>
    %88 = tpu.concatenate %33, %51, %69, %87 in 1 : vector<8x8xf32>, vector<8x8xf32>, vector<8x8xf32>, vector<8x8xf32> -> vector<8x32xf32>
    %c0_43 = arith.constant 0 : index
    %c0_44 = arith.constant 0 : index
    %89 = vector.load %arg8[%c0_43, %c0_44] : memref<32x32xf32, #tpu.memory_space<vmem>>, vector<32x32xf32>
    %cst_45 = arith.constant dense<0.000000e+00> : vector<8x32xf32>
    %90 = tpu.matmul %88, %89, %cst_45 {dimension_numbers = #tpu.dot_dimension_numbers<[1], [0], [0], [1], [0, 0, 1, 1], [], []>} : vector<8x32xf32>, vector<32x32xf32>, vector<8x32xf32> -> vector<8x32xf32>
    %c0_46 = arith.constant 0 : index
    %c0_47 = arith.constant 0 : index
    %91 = vector.load %arg9[%c0_46, %c0_47] : memref<1x32xf32, #tpu.memory_space<vmem>>, vector<1x32xf32>
    %92 = vector.broadcast %91 : vector<1x32xf32> to vector<8x32xf32>
    %93 = arith.addf %90, %92 : vector<8x32xf32>
    %c0_48 = arith.constant 0 : index
    %c0_49 = arith.constant 0 : index
    %c0_50 = arith.constant 0 : index
    %94 = vector.load %arg10[%c0_48, %c0_49, %c0_50] : memref<1x8x32xf32, #tpu.memory_space<vmem>>, vector<1x8x32xf32>
    %95 = vector.shape_cast %94 : vector<1x8x32xf32> to vector<8x32xf32>
    %96 = vector.shape_cast %93 : vector<8x32xf32> to vector<1x8x32xf32>
    tpu.vector_store %arg10[%c0_48, %c0_49, %c0_50], %96 {strides = array<i32>} : memref<1x8x32xf32, #tpu.memory_space<vmem>>, vector<1x8x32xf32>,
    return
  }
  func.func @transform_0(%arg0: i32, %arg1: i32) -> (i32, i32, i32) {
    %c0_i32 = arith.constant 0 : i32
    %c0_i32_0 = arith.constant 0 : i32
    return %arg0, %arg1, %c0_i32 : i32, i32, i32
  }
  func.func @transform_1(%arg0: i32, %arg1: i32) -> (i32, i32, i32) {
    %c0_i32 = arith.constant 0 : i32
    %c0_i32_0 = arith.constant 0 : i32
    %c0_i32_1 = arith.constant 0 : i32
    return %arg0, %c0_i32, %c0_i32_0 : i32, i32, i32
  }
  func.func @transform_2(%arg0: i32, %arg1: i32) -> (i32, i32) {
    %c0_i32 = arith.constant 0 : i32
    %c0_i32_0 = arith.constant 0 : i32
    %c0_i32_1 = arith.constant 0 : i32
    return %c0_i32, %c0_i32_0 : i32, i32
  }
  func.func @transform_3(%arg0: i32, %arg1: i32) -> (i32, i32) {
    %c0_i32 = arith.constant 0 : i32
    %c0_i32_0 = arith.constant 0 : i32
    %c0_i32_1 = arith.constant 0 : i32
    return %c0_i32, %c0_i32_0 : i32, i32
  }
  func.func @transform_4(%arg0: i32, %arg1: i32) -> (i32, i32) {
    %c0_i32 = arith.constant 0 : i32
    %c0_i32_0 = arith.constant 0 : i32
    %c0_i32_1 = arith.constant 0 : i32
    return %c0_i32, %c0_i32_0 : i32, i32
  }
  func.func @transform_5(%arg0: i32, %arg1: i32) -> (i32, i32) {
    %c0_i32 = arith.constant 0 : i32
    %c0_i32_0 = arith.constant 0 : i32
    %c0_i32_1 = arith.constant 0 : i32
    return %c0_i32, %c0_i32_0 : i32, i32
  }
  func.func @transform_6(%arg0: i32, %arg1: i32) -> (i32, i32) {
    %c0_i32 = arith.constant 0 : i32
    %c0_i32_0 = arith.constant 0 : i32
    %c0_i32_1 = arith.constant 0 : i32
    return %c0_i32, %c0_i32_0 : i32, i32
  }
  func.func @transform_7(%arg0: i32, %arg1: i32) -> (i32, i32) {
    %c0_i32 = arith.constant 0 : i32
    %c0_i32_0 = arith.constant 0 : i32
    %c0_i32_1 = arith.constant 0 : i32
    return %c0_i32, %c0_i32_0 : i32, i32
  }
  func.func @transform_8(%arg0: i32, %arg1: i32) -> (i32, i32, i32) {
    %c0_i32 = arith.constant 0 : i32
    %c0_i32_0 = arith.constant 0 : i32
    return %arg0, %arg1, %c0_i32 : i32, i32, i32
  }
  func.func @transform_9(%arg0: i32, %arg1: i32) -> (i32, i32, i32, i32) {
    %c0_i32 = arith.constant 0 : i32
    %c0_i32_0 = arith.constant 0 : i32
    %c0_i32_1 = arith.constant 0 : i32
    return %arg0, %c0_i32, %arg1, %c0_i32_0 : i32, i32, i32, i32
  }
}

</mosaic_0001>

<llo_original>
// kernel: multi_head_attention.1
$region0: #{multi_head_attention.1}
  #allocation0 [shape = 'u32[]', space=smem, size = 0x4, offset = 0x4, fixed_abs, tag = 'smem constant byte address 0x4 - core index']
  #allocation1 [shape = 'u32[144,128]{1,0:T(1,128)}', space=vmem, size = 0x12000, scoped, tag = 'internal scratch']
  %s0 = inlined_call_operand.vmem [shape: f32[2,8,32], index: 0, kind: input, shape index: {}, may-alias: {0,1}]
  %s1 = inlined_call_operand.vmem [shape: f32[2,8,32], index: 1, kind: input, shape index: {}, may-alias: {0,1}]
  %s2 = inlined_call_operand.vmem [shape: f32[32,32], index: 2, kind: input, shape index: {}]
  %s3 = inlined_call_operand.vmem [shape: f32[1,32], index: 3, kind: input, shape index: {}]
  %s4 = inlined_call_operand.vmem [shape: f32[32,64], index: 4, kind: input, shape index: {}]
  %s5 = inlined_call_operand.vmem [shape: f32[1,64], index: 5, kind: input, shape index: {}]
  %s6 = inlined_call_operand.vmem [shape: f32[32,32], index: 6, kind: input, shape index: {}]
  %s7 = inlined_call_operand.vmem [shape: f32[1,32], index: 7, kind: input, shape index: {}]
  %s8 = inlined_call_operand.hbm [shape: f32[2,8,32], index: 8, kind: output, shape index: {0}]
  %s9 = inlined_call_operand.hbm [shape: f32[2,4,8,8], index: 9, kind: output, shape index: {1}]
  %10 = xla_tuple %s8, %s9
  %s11 = sld [smem:[#allocation0]]
  $region73: #{multi_head_attention.1} parent=0
    _
  %s13 = ssub.s32 1, %s11
  %s14 = scalar_select 0, %s13, %s11
  $region1: #{multi_head_attention.1} parent=0
    #allocation2 [shape = 'u8[8192]{0}', space=vmem, size = 0x2000, scoped, tag = 'output window, operand 0']
    #allocation3 [shape = 's32[2]{0}', space=sflag, size = 0x8, scoped, tag = 'scoped memory for multi_head_attention.1']
    #allocation4 [shape = 'u8[32768]{0}', space=vmem, size = 0x8000, scoped, tag = 'output window, operand 1']
    #allocation5 [shape = 's32[2]{0}', space=sflag, size = 0x8, scoped, tag = 'scoped memory for multi_head_attention.1']
    %15 = vsyncpa [#allocation3], 0
    %s16 = scalar_lea.sflag [#allocation3], 1
    %17 = vsyncpa %s16, 0
    %18 = vsyncpa [#allocation5], 0
    %s19 = scalar_lea.sflag [#allocation5], 1
    %20 = vsyncpa %s19, 0
    loop: start=0, step=1, limit=4
    $region2: #{multi_head_attention.1} parent=1 // loop_pre_header
      _
    $region3: #{multi_head_attention.1} parent=1 // loop_header
      %s22 = sphi 0, %s26
      %p23 = scmp.ge.s32.totalorder %s22, 4
      %s29 = sphi 0, %s41
      %s30 = sphi 0, %s37
      %s31 = sphi 0, %s29
      %s32 = sphi 0, %s30
      %s33 = sphi 0, %s31
      %s34 = sphi 0, %s32
      %s46 = sphi 0, %s48
      %s49 = sphi 0, %s46
      %s50 = sphi 0, %s49
      %s66 = sphi 0, %s50
      %s72 = sphi 0, %s74
      %s75 = sphi 0, %s72
      %s76 = sphi 0, %s75
      %s92 = sphi 0, %s76
      %s96 = sphi 0, %s96
      %s98 = sphi 0, %s96
      %s99 = sphi 0, %s98
      %s113 = sphi 0, %s99
      %s117 = sphi 0, %s117
      %s119 = sphi 0, %s117
      %s120 = sphi 0, %s119
      %s134 = sphi 0, %s120
      %s138 = sphi 0, %s138
      %s140 = sphi 0, %s138
      %s141 = sphi 0, %s140
      %s155 = sphi 0, %s141
      %s159 = sphi 0, %s159
      %s161 = sphi 0, %s159
      %s162 = sphi 0, %s161
      %s176 = sphi 0, %s162
      %s180 = sphi 0, %s180
      %s182 = sphi 0, %s180
      %s183 = sphi 0, %s182
      %s197 = sphi 0, %s183
      %s201 = sphi 0, %s201
      %s203 = sphi 0, %s201
      %s204 = sphi 0, %s203
      %s218 = sphi 0, %s204
      %s226 = sphi 0, %s228
      %s229 = sphi 0, %s226
      %s230 = sphi 0, %s229
      %s246 = sphi 0, %s230
      %s254 = sphi 0, %s256
      %s257 = sphi 0, %s254
      %s258 = sphi 0, %s257
      %s274 = sphi 0, %s258
    $region4: #{multi_head_attention.1} parent=1 // loop_header_branch
      %25 = sbr.rel (%p23) target = $region8
    $region5: #{multi_head_attention.1} parent=1 // loop_body
      %s27 = ssub.s32 %s22, 1
      %s28 = ssub.s32 %s22, 2
      %s35 = sadd.s32 1, %s30
      %p36 = scmp.ge.s32.totalorder %s35, 1
      %s37 = scalar_select %p36, 0, %s35
      %s38 = sadd.s32 1, %s29
      %s39 = scalar_select %p36, %s38, %s29
      %p40 = scmp.ge.s32.totalorder %s39, 2
      %s41 = scalar_select %p40, 0, %s39
      %s42 = ssub.s32 %s29, %s41
      %s43 = ssub.s32 %s30, %s37
      %s44 = sor.u32 %s42, %s43
      %p45 = scmp.eq.s32.totalorder %s44, 0
      %s47 = sadd.s32 %s46, 1
      %s48 = scalar_select %p45, %s46, %s47
      %p51 = pneg %p45
      %p52 = scmp.eq.s32.totalorder %s22, 1
      %p53 = por %p51, %p52
      %p54 = scmp.ne.s32.totalorder %s46, %s49
      %p55 = scmp.eq.s32.totalorder %s22, 0
      %p56 = por %p54, %p55
      %p57 = scmp.ne.s32.totalorder %s46, %s49
      %p58 = scmp.eq.s32.totalorder %s27, 1
      %p59 = por %p57, %p58
      %p60 = scmp.ne.s32.totalorder %s49, %s50
      %p61 = scmp.eq.s32.totalorder %s27, 0
      %p62 = por %p60, %p61
      %p63 = scmp.ne.s32.totalorder %s49, %s50
      %p64 = scmp.eq.s32.totalorder %s28, 1
      %p65 = por %p63, %p64
      %p67 = scmp.ne.s32.totalorder %s50, %s66
      %p68 = scmp.eq.s32.totalorder %s28, 0
      %p69 = por %p67, %p68
      %s70 = ssub.s32 %s29, %s41
      %p71 = scmp.eq.s32.totalorder %s70, 0
      %s73 = sadd.s32 %s72, 1
      %s74 = scalar_select %p71, %s72, %s73
      %p77 = pneg %p71
      %p78 = scmp.eq.s32.totalorder %s22, 1
      %p79 = por %p77, %p78
      %p80 = scmp.ne.s32.totalorder %s72, %s75
      %p81 = scmp.eq.s32.totalorder %s22, 0
      %p82 = por %p80, %p81
      %p83 = scmp.ne.s32.totalorder %s72, %s75
      %p84 = scmp.eq.s32.totalorder %s27, 1
      %p85 = por %p83, %p84
      %p86 = scmp.ne.s32.totalorder %s75, %s76
      %p87 = scmp.eq.s32.totalorder %s27, 0
      %p88 = por %p86, %p87
      %p89 = scmp.ne.s32.totalorder %s75, %s76
      %p90 = scmp.eq.s32.totalorder %s28, 1
      %p91 = por %p89, %p90
      %p93 = scmp.ne.s32.totalorder %s76, %s92
      %p94 = scmp.eq.s32.totalorder %s28, 0
      %p95 = por %p93, %p94
      %s97 = sadd.s32 %s96, 1
      %p100 = scmp.eq.s32.totalorder %s22, 1
      %p101 = scmp.ne.s32.totalorder %s96, %s98
      %p102 = scmp.eq.s32.totalorder %s22, 0
      %p103 = por %p101, %p102
      %p104 = scmp.ne.s32.totalorder %s96, %s98
      %p105 = scmp.eq.s32.totalorder %s27, 1
      %p106 = por %p104, %p105
      %p107 = scmp.ne.s32.totalorder %s98, %s99
      %p108 = scmp.eq.s32.totalorder %s27, 0
      %p109 = por %p107, %p108
      %p110 = scmp.ne.s32.totalorder %s98, %s99
      %p111 = scmp.eq.s32.totalorder %s28, 1
      %p112 = por %p110, %p111
      %p114 = scmp.ne.s32.totalorder %s99, %s113
      %p115 = scmp.eq.s32.totalorder %s28, 0
      %p116 = por %p114, %p115
      %s118 = sadd.s32 %s117, 1
      %p121 = scmp.eq.s32.totalorder %s22, 1
      %p122 = scmp.ne.s32.totalorder %s117, %s119
      %p123 = scmp.eq.s32.totalorder %s22, 0
      %p124 = por %p122, %p123
      %p125 = scmp.ne.s32.totalorder %s117, %s119
      %p126 = scmp.eq.s32.totalorder %s27, 1
      %p127 = por %p125, %p126
      %p128 = scmp.ne.s32.totalorder %s119, %s120
      %p129 = scmp.eq.s32.totalorder %s27, 0
      %p130 = por %p128, %p129
      %p131 = scmp.ne.s32.totalorder %s119, %s120
      %p132 = scmp.eq.s32.totalorder %s28, 1
      %p133 = por %p131, %p132
      %p135 = scmp.ne.s32.totalorder %s120, %s134
      %p136 = scmp.eq.s32.totalorder %s28, 0
      %p137 = por %p135, %p136
      %s139 = sadd.s32 %s138, 1
      %p142 = scmp.eq.s32.totalorder %s22, 1
      %p143 = scmp.ne.s32.totalorder %s138, %s140
      %p144 = scmp.eq.s32.totalorder %s22, 0
      %p145 = por %p143, %p144
      %p146 = scmp.ne.s32.totalorder %s138, %s140
      %p147 = scmp.eq.s32.totalorder %s27, 1
      %p148 = por %p146, %p147
      %p149 = scmp.ne.s32.totalorder %s140, %s141
      %p150 = scmp.eq.s32.totalorder %s27, 0
      %p151 = por %p149, %p150
      %p152 = scmp.ne.s32.totalorder %s140, %s141
      %p153 = scmp.eq.s32.totalorder %s28, 1
      %p154 = por %p152, %p153
      %p156 = scmp.ne.s32.totalorder %s141, %s155
      %p157 = scmp.eq.s32.totalorder %s28, 0
      %p158 = por %p156, %p157
      %s160 = sadd.s32 %s159, 1
      %p163 = scmp.eq.s32.totalorder %s22, 1
      %p164 = scmp.ne.s32.totalorder %s159, %s161
      %p165 = scmp.eq.s32.totalorder %s22, 0
      %p166 = por %p164, %p165
      %p167 = scmp.ne.s32.totalorder %s159, %s161
      %p168 = scmp.eq.s32.totalorder %s27, 1
      %p169 = por %p167, %p168
      %p170 = scmp.ne.s32.totalorder %s161, %s162
      %p171 = scmp.eq.s32.totalorder %s27, 0
      %p172 = por %p170, %p171
      %p173 = scmp.ne.s32.totalorder %s161, %s162
      %p174 = scmp.eq.s32.totalorder %s28, 1
      %p175 = por %p173, %p174
      %p177 = scmp.ne.s32.totalorder %s162, %s176
      %p178 = scmp.eq.s32.totalorder %s28, 0
      %p179 = por %p177, %p178
      %s181 = sadd.s32 %s180, 1
      %p184 = scmp.eq.s32.totalorder %s22, 1
      %p185 = scmp.ne.s32.totalorder %s180, %s182
      %p186 = scmp.eq.s32.totalorder %s22, 0
      %p187 = por %p185, %p186
      %p188 = scmp.ne.s32.totalorder %s180, %s182
      %p189 = scmp.eq.s32.totalorder %s27, 1
      %p190 = por %p188, %p189
      %p191 = scmp.ne.s32.totalorder %s182, %s183
      %p192 = scmp.eq.s32.totalorder %s27, 0
      %p193 = por %p191, %p192
      %p194 = scmp.ne.s32.totalorder %s182, %s183
      %p195 = scmp.eq.s32.totalorder %s28, 1
      %p196 = por %p194, %p195
      %p198 = scmp.ne.s32.totalorder %s183, %s197
      %p199 = scmp.eq.s32.totalorder %s28, 0
      %p200 = por %p198, %p199
      %s202 = sadd.s32 %s201, 1
      %p205 = scmp.eq.s32.totalorder %s22, 1
      %p206 = scmp.ne.s32.totalorder %s201, %s203
      %p207 = scmp.eq.s32.totalorder %s22, 0
      %p208 = por %p206, %p207
      %p209 = scmp.ne.s32.totalorder %s201, %s203
      %p210 = scmp.eq.s32.totalorder %s27, 1
      %p211 = por %p209, %p210
      %p212 = scmp.ne.s32.totalorder %s203, %s204
      %p213 = scmp.eq.s32.totalorder %s27, 0
      %p214 = por %p212, %p213
      %p215 = scmp.ne.s32.totalorder %s203, %s204
      %p216 = scmp.eq.s32.totalorder %s28, 1
      %p217 = por %p215, %p216
      %p219 = scmp.ne.s32.totalorder %s204, %s218
      %p220 = scmp.eq.s32.totalorder %s28, 0
      %p221 = por %p219, %p220
      %s222 = ssub.s32 %s29, %s41
      %s223 = ssub.s32 %s30, %s37
      %s224 = sor.u32 %s222, %s223
      %p225 = scmp.eq.s32.totalorder %s224, 0
      %s227 = sadd.s32 %s226, 1
      %s228 = scalar_select %p225, %s226, %s227
      %p231 = pneg %p225
      %p232 = scmp.eq.s32.totalorder %s22, 1
      %p233 = por %p231, %p232
      %p234 = scmp.ne.s32.totalorder %s226, %s229
      %p235 = scmp.eq.s32.totalorder %s22, 0
      %p236 = por %p234, %p235
      %p237 = scmp.ne.s32.totalorder %s226, %s229
      %p238 = scmp.eq.s32.totalorder %s27, 1
      %p239 = por %p237, %p238
      %p240 = scmp.ne.s32.totalorder %s229, %s230
      %p241 = scmp.eq.s32.totalorder %s27, 0
      %p242 = por %p240, %p241
      %p243 = scmp.ne.s32.totalorder %s229, %s230
      %p244 = scmp.eq.s32.totalorder %s28, 1
      %p245 = por %p243, %p244
      %p247 = scmp.ne.s32.totalorder %s230, %s246
      %p248 = scmp.eq.s32.totalorder %s28, 0
      %p249 = por %p247, %p248
      %s250 = ssub.s32 %s29, %s41
      %s251 = ssub.s32 %s30, %s37
      %s252 = sor.u32 %s250, %s251
      %p253 = scmp.eq.s32.totalorder %s252, 0
      %s255 = sadd.s32 %s254, 1
      %s256 = scalar_select %p253, %s254, %s255
      %p259 = pneg %p253
      %p260 = scmp.eq.s32.totalorder %s22, 1
      %p261 = por %p259, %p260
      %p262 = scmp.ne.s32.totalorder %s254, %s257
      %p263 = scmp.eq.s32.totalorder %s22, 0
      %p264 = por %p262, %p263
      %p265 = scmp.ne.s32.totalorder %s254, %s257
      %p266 = scmp.eq.s32.totalorder %s27, 1
      %p267 = por %p265, %p266
      %p268 = scmp.ne.s32.totalorder %s257, %s258
      %p269 = scmp.eq.s32.totalorder %s27, 0
      %p270 = por %p268, %p269
      %p271 = scmp.ne.s32.totalorder %s257, %s258
      %p272 = scmp.eq.s32.totalorder %s28, 1
      %p273 = por %p271, %p272
      %p275 = scmp.ne.s32.totalorder %s258, %s274
      %p276 = scmp.eq.s32.totalorder %s28, 0
      %p277 = por %p275, %p276
      %p278 = scmp.le.s32.totalorder 1, %s22
      %p279 = scmp.lt.s32.totalorder %s22, 3
      %p280 = pnand %p278, %p279
      %p281 = pneg %p280
      // Predicated region
      $region9: #{multi_head_attention.1} parent=5 // pred_check
        _
      $region10: #{multi_head_attention.1} parent=5 // pred_check_branch
        %283 = sbr.rel (%p280) target = $region12
      $region11: #{multi_head_attention.1} parent=5 // pred_region
        %s284 = ssub.s32 %s22, 1
        // Predicated region
        $region13: #{multi_head_attention.1} parent=11 // pred_check
          %p285 = pneg %p109
        $region14: #{multi_head_attention.1} parent=11 // pred_check_branch
          %287 = sbr.rel (%p285) target = $region16
        $region15: #{multi_head_attention.1} parent=11 // pred_region
          _
        $region16: #{multi_head_attention.1} parent=11 // pred_fallthru
          _
        // Predicated region
        $region17: #{multi_head_attention.1} parent=11 // pred_check
          %p288 = pneg %p130
        $region18: #{multi_head_attention.1} parent=11 // pred_check_branch
          %290 = sbr.rel (%p288) target = $region20
        $region19: #{multi_head_attention.1} parent=11 // pred_region
          _
        $region20: #{multi_head_attention.1} parent=11 // pred_fallthru
          _
        // Predicated region
        $region21: #{multi_head_attention.1} parent=11 // pred_check
          %p291 = pneg %p151
        $region22: #{multi_head_attention.1} parent=11 // pred_check_branch
          %293 = sbr.rel (%p291) target = $region24
        $region23: #{multi_head_attention.1} parent=11 // pred_region
          _
        $region24: #{multi_head_attention.1} parent=11 // pred_fallthru
          _
        // Predicated region
        $region25: #{multi_head_attention.1} parent=11 // pred_check
          %p294 = pneg %p172
        $region26: #{multi_head_attention.1} parent=11 // pred_check_branch
          %296 = sbr.rel (%p294) target = $region28
        $region27: #{multi_head_attention.1} parent=11 // pred_region
          _
        $region28: #{multi_head_attention.1} parent=11 // pred_fallthru
          _
        // Predicated region
        $region29: #{multi_head_attention.1} parent=11 // pred_check
          %p297 = pneg %p193
        $region30: #{multi_head_attention.1} parent=11 // pred_check_branch
          %299 = sbr.rel (%p297) target = $region32
        $region31: #{multi_head_attention.1} parent=11 // pred_region
          _
        $region32: #{multi_head_attention.1} parent=11 // pred_fallthru
          _
        // Predicated region
        $region33: #{multi_head_attention.1} parent=11 // pred_check
          %p300 = pneg %p214
        $region34: #{multi_head_attention.1} parent=11 // pred_check_branch
          %302 = sbr.rel (%p300) target = $region36
        $region35: #{multi_head_attention.1} parent=11 // pred_region
          _
        $region36: #{multi_head_attention.1} parent=11 // pred_fallthru
          _
      $region12: #{multi_head_attention.1} parent=5 // pred_fallthru
        _
      %p303 = scmp.lt.s32.totalorder %s22, 2
      // Predicated region
      $region37: #{multi_head_attention.1} parent=5 // pred_check
        %p304 = pneg %p303
      $region38: #{multi_head_attention.1} parent=5 // pred_check_branch
        %306 = sbr.rel (%p304) target = $region40
      $region39: #{multi_head_attention.1} parent=5 // pred_region
        // Predicated region
        $region41: #{multi_head_attention.1} parent=39 // pred_check
          %p307 = pneg %p56
        $region42: #{multi_head_attention.1} parent=39 // pred_check_branch
          %309 = sbr.rel (%p307) target = $region44
        $region43: #{multi_head_attention.1} parent=39 // pred_region
          %p310 = scmp.lt.s32.totalorder %s29, 1
          %s311 = scalar_select %p310, %s29, 1
          %p312 = scmp.lt.s32.totalorder %s30, 0
          %s313 = scalar_select %p312, %s30, 0
          %s314 = sadd.s32 %s313, %s311
          %s315 = smul.addr %s314, 8
          %s316 = scalar_lea.vmem %s0, %s315
        $region44: #{multi_head_attention.1} parent=39 // pred_fallthru
          _
        // Predicated region
        $region45: #{multi_head_attention.1} parent=39 // pred_check
          %p317 = pneg %p82
        $region46: #{multi_head_attention.1} parent=39 // pred_check_branch
          %319 = sbr.rel (%p317) target = $region48
        $region47: #{multi_head_attention.1} parent=39 // pred_region
          %p320 = scmp.lt.s32.totalorder %s29, 1
          %s321 = scalar_select %p320, %s29, 1
          %s322 = smul.addr %s321, 8
          %s323 = scalar_lea.vmem %s1, %s322
        $region48: #{multi_head_attention.1} parent=39 // pred_fallthru
          _
      $region40: #{multi_head_attention.1} parent=5 // pred_fallthru
        _
      %p324 = scmp.le.s32.totalorder 1, %s22
      %p325 = scmp.lt.s32.totalorder %s22, 3
      %p326 = pnand %p324, %p325
      %p327 = pneg %p326
      // Predicated region
      $region49: #{multi_head_attention.1} parent=5 // pred_check
        _
      $region50: #{multi_head_attention.1} parent=5 // pred_check_branch
        %329 = sbr.rel (%p326) target = $region52
      $region51: #{multi_head_attention.1} parent=5 // pred_region
        %s330 = ssub.s32 %s22, 1
        %p331 = scmp.lt.s32.totalorder %s31, 1
        %s332 = scalar_select %p331, %s31, 1
        %p333 = scmp.lt.s32.totalorder %s32, 0
        %s334 = scalar_select %p333, %s32, 0
        %s335 = sadd.s32 %s334, %s332
        %s336 = smul.addr %s335, 8
        %s337 = scalar_lea.vmem %s0, %s336
        %p338 = pneg %p62
        %p339 = pneg %p59
        %p340 = scmp.lt.s32.totalorder %s31, 1
        %s341 = scalar_select %p340, %s31, 1
        %s342 = smul.addr %s341, 8
        %s343 = scalar_lea.vmem %s1, %s342
        %p344 = pneg %p88
        %p345 = pneg %p85
        %p346 = pneg %p109
        %p347 = pneg %p106
        %p348 = pneg %p130
        %p349 = pneg %p127
        %p350 = pneg %p151
        %p351 = pneg %p148
        %p352 = pneg %p172
        %p353 = pneg %p169
        %p354 = pneg %p193
        %p355 = pneg %p190
        %p356 = pneg %p214
        %p357 = pneg %p211
        %p358 = pneg %p242
        %p359 = pneg %p239
        %s360 = sand.u32 %s229, 1
        %s361 = scalar_lea.sflag [#allocation3], %s360
        %s362 = sand.u32 %s229, 1
        %s363 = smul.addr %s362, 8
        %s364 = scalar_lea.vmem [#allocation2], %s363
        %p365 = pneg %p270
        %p366 = pneg %p267
        %s367 = sand.u32 %s257, 1
        %s368 = scalar_lea.sflag [#allocation5], %s367
        %s369 = sand.u32 %s257, 1
        %s370 = smul.addr %s369, 32
        %s371 = scalar_lea.vmem [#allocation4], %s370
        %p372 = scmp.lt.s32.totalorder %s31, 1
        %s373 = scalar_select %p372, %s31, 1
        %p374 = scmp.lt.s32.totalorder %s32, 0
        %s375 = scalar_select %p374, %s32, 0
        %s376 = sadd.s32 %s375, %s373
        %s377 = smul.addr %s376, 8
        %s378 = scalar_lea.vmem %s0, %s377
        %p379 = scmp.lt.s32.totalorder %s31, 1
        %s380 = scalar_select %p379, %s31, 1
        %s381 = smul.addr %s380, 8
        %s382 = scalar_lea.vmem %s1, %s381
        %v383 = vld [vmem:[%s378] sm:$0xff]
        %v384 = vld [vmem:[%s382] sm:$0xff]
        %v385 = vld [vmem:[%s2] sm:$0xff]
        %v386 = vld [vmem:[%s2 + $0x8] sm:$0xff]
        %v387 = vld [vmem:[%s2 + $0x10] sm:$0xff]
        %v388 = vld [vmem:[%s2 + $0x18] sm:$0xff]
        %v389 = vld [vmem:[%s3] sm:$0x1]
        %v391 = vlaneseq
        %v392 = vshrl.u32 %v391, 7
        %v393 = vsub.s32 0, %v392
        %v394 = vrot.slane %v389, %v393
        %vm396 = vcmask 261120
        %v398 = vsel %vm396, %v383, 0
        %400 = vmatprep.subr.mxu0 0.0
        %401 = vmatpush1.msra.mxu0 %v385
        %402 = vmatprep.subr.mxu0 0.0
        %403 = vmatpush1.msra.mxu0 %v386
        %404 = vmatprep.subr.mxu0 0.0
        %405 = vmatpush1.msra.mxu0 %v387
        %406 = vmatprep.subr.mxu0 0.0
        %407 = vmatpush1.msra.mxu0 %v388
        %408 = vmatprep.subr.mxu0 0.0
        %409 = vmatpush1.msra.mxu0 0.0
        %410 = vmatprep.subr.mxu0 0.0
        %411 = vmatpush1.msra.mxu0 0.0
        %412 = vmatprep.subr.mxu0 0.0
        %413 = vmatpush1.msra.mxu0 0.0
        %414 = vmatprep.subr.mxu0 0.0
        %415 = vmatpush1.msra.mxu0 0.0
        %416 = vmatprep.subr.mxu0 0.0
        %417 = vmatpush1.msra.mxu0 0.0
        %418 = vmatprep.subr.mxu0 0.0
        %419 = vmatpush1.msra.mxu0 0.0
        %420 = vmatprep.subr.mxu0 0.0
        %421 = vmatpush1.msra.mxu0 0.0
        %422 = vmatprep.subr.mxu0 0.0
        %423 = vmatpush1.msra.mxu0 0.0
        %424 = vmatprep.subr.mxu0 0.0
        %425 = vmatpush1.msra.mxu0 0.0
        %426 = vmatprep.subr.mxu0 0.0
        %427 = vmatpush1.msra.mxu0 0.0
        %428 = vmatprep.subr.mxu0 0.0
        %429 = vmatpush1.msra.mxu0 0.0
        %430 = vmatprep.subr.mxu0 0.0
        %431 = vmatpush1.msra.mxu0 0.0
        %432 = vmatprep.subr.mxu0 0.0
        %433 = vmatpush1.msra.mxu0 0.0
        %434 = vmatprep.subr.mxu0 0.0
        %435 = vmatpush1.msra.mxu0 0.0
        %436 = vmatprep.subr.mxu0 0.0
        %437 = vmatpush1.msra.mxu0 0.0
        %438 = vmatprep.subr.mxu0 0.0
        %439 = vmatpush1.msra.mxu0 0.0
        %440 = vmatprep.subr.mxu0 0.0
        %441 = vmatpush1.msra.mxu0 0.0
        %442 = vmatprep.subr.mxu0 0.0
        %443 = vmatpush1.msra.mxu0 0.0
        %444 = vmatprep.subr.mxu0 0.0
        %445 = vmatpush1.msra.mxu0 0.0
        %446 = vmatprep.subr.mxu0 0.0
        %447 = vmatpush1.msra.mxu0 0.0
        %448 = vmatprep.subr.mxu0 0.0
        %449 = vmatpush1.msra.mxu0 0.0
        %450 = vmatprep.subr.mxu0 0.0
        %451 = vmatpush1.msra.mxu0 0.0
        %452 = vmatprep.subr.mxu0 0.0
        %453 = vmatpush1.msra.mxu0 0.0
        %454 = vmatprep.subr.mxu0 0.0
        %455 = vmatpush1.msra.mxu0 0.0
        %456 = vmatprep.subr.mxu0 0.0
        %457 = vmatpush1.msra.mxu0 0.0
        %458 = vmatprep.subr.mxu0 0.0
        %459 = vmatpush1.msra.mxu0 0.0
        %460 = vmatprep.subr.mxu0 0.0
        %461 = vmatpush1.msra.mxu0 0.0
        %462 = vmatprep.subr.mxu0 0.0
        %463 = vmatpush1.msra.mxu0 0.0
        %464 = vmatprep.mubr.f32.mxu0 0.0
        %465 = vmatmul.mubr.f32.gmra.mrb[0].mxu0 %v398
        %v466 = vpop.f32.mrb[0].mxu0
        %v467 = vadd.f32 %v394, %v466
        %v468 = vpop.f32.mrb[0].mxu0
        %469 = vdwg.mxu0
        %v470 = vld [vmem:[%s4] sm:$0xff]
        %v471 = vld [vmem:[%s4 + $0x8] sm:$0xff]
        %v472 = vld [vmem:[%s4 + $0x10] sm:$0xff]
        %v473 = vld [vmem:[%s4 + $0x18] sm:$0xff]
        %v474 = vld [vmem:[%s5] sm:$0x1]
        %v476 = vlaneseq
        %v477 = vshrl.u32 %v476, 7
        %v478 = vsub.s32 0, %v477
        %v479 = vrot.slane %v474, %v478
        %v482 = vsel %vm396, %v384, 0
        %484 = vmatprep.subr.mxu0 0.0
        %485 = vmatpush1.msra.mxu0 %v470
        %486 = vmatprep.subr.mxu0 0.0
        %487 = vmatpush1.msra.mxu0 %v471
        %488 = vmatprep.subr.mxu0 0.0
        %489 = vmatpush1.msra.mxu0 %v472
        %490 = vmatprep.subr.mxu0 0.0
        %491 = vmatpush1.msra.mxu0 %v473
        %492 = vmatprep.subr.mxu0 0.0
        %493 = vmatpush1.msra.mxu0 0.0
        %494 = vmatprep.subr.mxu0 0.0
        %495 = vmatpush1.msra.mxu0 0.0
        %496 = vmatprep.subr.mxu0 0.0
        %497 = vmatpush1.msra.mxu0 0.0
        %498 = vmatprep.subr.mxu0 0.0
        %499 = vmatpush1.msra.mxu0 0.0
        %500 = vmatprep.subr.mxu0 0.0
        %501 = vmatpush1.msra.mxu0 0.0
        %502 = vmatprep.subr.mxu0 0.0
        %503 = vmatpush1.msra.mxu0 0.0
        %504 = vmatprep.subr.mxu0 0.0
        %505 = vmatpush1.msra.mxu0 0.0
        %506 = vmatprep.subr.mxu0 0.0
        %507 = vmatpush1.msra.mxu0 0.0
        %508 = vmatprep.subr.mxu0 0.0
        %509 = vmatpush1.msra.mxu0 0.0
        %510 = vmatprep.subr.mxu0 0.0
        %511 = vmatpush1.msra.mxu0 0.0
        %512 = vmatprep.subr.mxu0 0.0
        %513 = vmatpush1.msra.mxu0 0.0
        %514 = vmatprep.subr.mxu0 0.0
        %515 = vmatpush1.msra.mxu0 0.0
        %516 = vmatprep.subr.mxu0 0.0
        %517 = vmatpush1.msra.mxu0 0.0
        %518 = vmatprep.subr.mxu0 0.0
        %519 = vmatpush1.msra.mxu0 0.0
        %520 = vmatprep.subr.mxu0 0.0
        %521 = vmatpush1.msra.mxu0 0.0
        %522 = vmatprep.subr.mxu0 0.0
        %523 = vmatpush1.msra.mxu0 0.0
        %524 = vmatprep.subr.mxu0 0.0
        %525 = vmatpush1.msra.mxu0 0.0
        %526 = vmatprep.subr.mxu0 0.0
        %527 = vmatpush1.msra.mxu0 0.0
        %528 = vmatprep.subr.mxu0 0.0
        %529 = vmatpush1.msra.mxu0 0.0
        %530 = vmatprep.subr.mxu0 0.0
        %531 = vmatpush1.msra.mxu0 0.0
        %532 = vmatprep.subr.mxu0 0.0
        %533 = vmatpush1.msra.mxu0 0.0
        %534 = vmatprep.subr.mxu0 0.0
        %535 = vmatpush1.msra.mxu0 0.0
        %536 = vmatprep.subr.mxu0 0.0
        %537 = vmatpush1.msra.mxu0 0.0
        %538 = vmatprep.subr.mxu0 0.0
        %539 = vmatpush1.msra.mxu0 0.0
        %540 = vmatprep.subr.mxu0 0.0
        %541 = vmatpush1.msra.mxu0 0.0
        %542 = vmatprep.subr.mxu0 0.0
        %543 = vmatpush1.msra.mxu0 0.0
        %544 = vmatprep.subr.mxu0 0.0
        %545 = vmatpush1.msra.mxu0 0.0
        %546 = vmatprep.subr.mxu0 0.0
        %547 = vmatpush1.msra.mxu0 0.0
        %548 = vmatprep.mubr.f32.mxu0 0.0
        %549 = vmatmul.mubr.f32.gmra.mrb[0].mxu0 %v482
        %v550 = vpop.f32.mrb[0].mxu0
        %v551 = vadd.f32 %v479, %v550
        %v552 = vpop.f32.mrb[0].mxu0
        %553 = vdwg.mxu0
        %vm554 = vcmask 64512
        %v556 = vsel %vm554, %v467, 0
        %v559 = vsel %vm554, %v551, 0
        %561 = vmatprep.subr.mxu0 0.0
        %562 = vmatpush1.xpose.msra.mxu0 %v559
        %563 = vmatprep.subr.mxu0 0.0
        %564 = vmatpush1.xpose.msra.mxu0 0.0
        %565 = vmatprep.subr.mxu0 0.0
        %566 = vmatpush1.xpose.msra.mxu0 0.0
        %567 = vmatprep.subr.mxu0 0.0
        %568 = vmatpush1.xpose.msra.mxu0 0.0
        %569 = vmatprep.subr.mxu0 0.0
        %570 = vmatpush1.xpose.msra.mxu0 0.0
        %571 = vmatprep.subr.mxu0 0.0
        %572 = vmatpush1.xpose.msra.mxu0 0.0
        %573 = vmatprep.subr.mxu0 0.0
        %574 = vmatpush1.xpose.msra.mxu0 0.0
        %575 = vmatprep.subr.mxu0 0.0
        %576 = vmatpush1.xpose.msra.mxu0 0.0
        %577 = vmatprep.subr.mxu0 0.0
        %578 = vmatpush1.xpose.msra.mxu0 0.0
        %579 = vmatprep.subr.mxu0 0.0
        %580 = vmatpush1.xpose.msra.mxu0 0.0
        %581 = vmatprep.subr.mxu0 0.0
        %582 = vmatpush1.xpose.msra.mxu0 0.0
        %583 = vmatprep.subr.mxu0 0.0
        %584 = vmatpush1.xpose.msra.mxu0 0.0
        %585 = vmatprep.subr.mxu0 0.0
        %586 = vmatpush1.xpose.msra.mxu0 0.0
        %587 = vmatprep.subr.mxu0 0.0
        %588 = vmatpush1.xpose.msra.mxu0 0.0
        %589 = vmatprep.subr.mxu0 0.0
        %590 = vmatpush1.xpose.msra.mxu0 0.0
        %591 = vmatprep.subr.mxu0 0.0
        %592 = vmatpush1.xpose.msra.mxu0 0.0
        %593 = vmatprep.subr.mxu0 0.0
        %594 = vmatpush1.xpose.msra.mxu0 0.0
        %595 = vmatprep.subr.mxu0 0.0
        %596 = vmatpush1.xpose.msra.mxu0 0.0
        %597 = vmatprep.subr.mxu0 0.0
        %598 = vmatpush1.xpose.msra.mxu0 0.0
        %599 = vmatprep.subr.mxu0 0.0
        %600 = vmatpush1.xpose.msra.mxu0 0.0
        %601 = vmatprep.subr.mxu0 0.0
        %602 = vmatpush1.xpose.msra.mxu0 0.0
        %603 = vmatprep.subr.mxu0 0.0
        %604 = vmatpush1.xpose.msra.mxu0 0.0
        %605 = vmatprep.subr.mxu0 0.0
        %606 = vmatpush1.xpose.msra.mxu0 0.0
        %607 = vmatprep.subr.mxu0 0.0
        %608 = vmatpush1.xpose.msra.mxu0 0.0
        %609 = vmatprep.subr.mxu0 0.0
        %610 = vmatpush1.xpose.msra.mxu0 0.0
        %611 = vmatprep.subr.mxu0 0.0
        %612 = vmatpush1.xpose.msra.mxu0 0.0
        %613 = vmatprep.subr.mxu0 0.0
        %614 = vmatpush1.xpose.msra.mxu0 0.0
        %615 = vmatprep.subr.mxu0 0.0
        %616 = vmatpush1.xpose.msra.mxu0 0.0
        %617 = vmatprep.subr.mxu0 0.0
        %618 = vmatpush1.xpose.msra.mxu0 0.0
        %619 = vmatprep.subr.mxu0 0.0
        %620 = vmatpush1.xpose.msra.mxu0 0.0
        %621 = vmatprep.subr.mxu0 0.0
        %622 = vmatpush1.xpose.msra.mxu0 0.0
        %623 = vmatprep.subr.mxu0 0.0
        %624 = vmatpush1.xpose.msra.mxu0 0.0
        %625 = vmatprep.mubr.f32.mxu0 0.0
        %626 = vmatmul.mubr.f32.gmra.mrb[0].mxu0 %v556
        %v627 = vpop.f32.mrb[0].mxu0
        %v628 = vadd.f32 0.0, %v627
        %v629 = vpop.f32.mrb[0].mxu0
        %630 = vdwg.mxu0
        %v631 = vsel %vm554, %v628, -inf
        %632 = vmax.xlane.f32.xlu0 %v631
        %v633 = vpop.xlane.xlu0 %632
        %v634 = vsub.f32 %v628, %v633
        %v635 = vmul.f32 %v634, 1.442695
        %v636 = vpow.pop %v635
        %v637 = vsel %vm554, %v636, 0.0
        %638 = vadd.xlane.f32.xlu0 %v637
        %v639 = vpop.xlane.xlu0 %638
        %v640 = vrcp.pop %v639
        %v641 = vmul.f32 %v636, %v640
        %642 = vst.msk [vmem:[%s371] sm:$0xff] %vm554, %v641
        %643 = vrot.lane.b32.xlu0 %v551, 96
        %v644 = vpop.permute.xlu0 %643
        %v647 = vsel %vm554, %v641, 0
        %649 = vmatprep.subr.mxu0 0.0
        %650 = vmatpush1.msra.mxu0 %v644
        %651 = vmatprep.subr.mxu0 0.0
        %652 = vmatpush1.msra.mxu0 0.0
        %653 = vmatprep.subr.mxu0 0.0
        %654 = vmatpush1.msra.mxu0 0.0
        %655 = vmatprep.subr.mxu0 0.0
        %656 = vmatpush1.msra.mxu0 0.0
        %657 = vmatprep.subr.mxu0 0.0
        %658 = vmatpush1.msra.mxu0 0.0
        %659 = vmatprep.subr.mxu0 0.0
        %660 = vmatpush1.msra.mxu0 0.0
        %661 = vmatprep.subr.mxu0 0.0
        %662 = vmatpush1.msra.mxu0 0.0
        %663 = vmatprep.subr.mxu0 0.0
        %664 = vmatpush1.msra.mxu0 0.0
        %665 = vmatprep.subr.mxu0 0.0
        %666 = vmatpush1.msra.mxu0 0.0
        %667 = vmatprep.subr.mxu0 0.0
        %668 = vmatpush1.msra.mxu0 0.0
        %669 = vmatprep.subr.mxu0 0.0
        %670 = vmatpush1.msra.mxu0 0.0
        %671 = vmatprep.subr.mxu0 0.0
        %672 = vmatpush1.msra.mxu0 0.0
        %673 = vmatprep.subr.mxu0 0.0
        %674 = vmatpush1.msra.mxu0 0.0
        %675 = vmatprep.subr.mxu0 0.0
        %676 = vmatpush1.msra.mxu0 0.0
        %677 = vmatprep.subr.mxu0 0.0
        %678 = vmatpush1.msra.mxu0 0.0
        %679 = vmatprep.subr.mxu0 0.0
        %680 = vmatpush1.msra.mxu0 0.0
        %681 = vmatprep.subr.mxu0 0.0
        %682 = vmatpush1.msra.mxu0 0.0
        %683 = vmatprep.subr.mxu0 0.0
        %684 = vmatpush1.msra.mxu0 0.0
        %685 = vmatprep.subr.mxu0 0.0
        %686 = vmatpush1.msra.mxu0 0.0
        %687 = vmatprep.subr.mxu0 0.0
        %688 = vmatpush1.msra.mxu0 0.0
        %689 = vmatprep.subr.mxu0 0.0
        %690 = vmatpush1.msra.mxu0 0.0
        %691 = vmatprep.subr.mxu0 0.0
        %692 = vmatpush1.msra.mxu0 0.0
        %693 = vmatprep.subr.mxu0 0.0
        %694 = vmatpush1.msra.mxu0 0.0
        %695 = vmatprep.subr.mxu0 0.0
        %696 = vmatpush1.msra.mxu0 0.0
        %697 = vmatprep.subr.mxu0 0.0
        %698 = vmatpush1.msra.mxu0 0.0
        %699 = vmatprep.subr.mxu0 0.0
        %700 = vmatpush1.msra.mxu0 0.0
        %701 = vmatprep.subr.mxu0 0.0
        %702 = vmatpush1.msra.mxu0 0.0
        %703 = vmatprep.subr.mxu0 0.0
        %704 = vmatpush1.msra.mxu0 0.0
        %705 = vmatprep.subr.mxu0 0.0
        %706 = vmatpush1.msra.mxu0 0.0
        %707 = vmatprep.subr.mxu0 0.0
        %708 = vmatpush1.msra.mxu0 0.0
        %709 = vmatprep.subr.mxu0 0.0
        %710 = vmatpush1.msra.mxu0 0.0
        %711 = vmatprep.subr.mxu0 0.0
        %712 = vmatpush1.msra.mxu0 0.0
        %713 = vmatprep.mubr.f32.mxu0 0.0
        %714 = vmatmul.mubr.f32.gmra.mrb[0].mxu0 %v647
        %v715 = vpop.f32.mrb[0].mxu0
        %v716 = vadd.f32 0.0, %v715
        %v717 = vpop.f32.mrb[0].mxu0
        %718 = vdwg.mxu0
        %719 = vrot.lane.b32.xlu0 %v467, 120
        %v720 = vpop.permute.xlu0 %719
        %721 = vrot.lane.b32.xlu0 %v551, 120
        %v722 = vpop.permute.xlu0 %721
        %v723 = vsel %vm554, %v720, 0
        %v725 = vsel %vm554, %v722, 0
        %727 = vmatprep.subr.mxu0 0.0
        %728 = vmatpush1.xpose.msra.mxu0 %v725
        %729 = vmatprep.subr.mxu0 0.0
        %730 = vmatpush1.xpose.msra.mxu0 0.0
        %731 = vmatprep.subr.mxu0 0.0
        %732 = vmatpush1.xpose.msra.mxu0 0.0
        %733 = vmatprep.subr.mxu0 0.0
        %734 = vmatpush1.xpose.msra.mxu0 0.0
        %735 = vmatprep.subr.mxu0 0.0
        %736 = vmatpush1.xpose.msra.mxu0 0.0
        %737 = vmatprep.subr.mxu0 0.0
        %738 = vmatpush1.xpose.msra.mxu0 0.0
        %739 = vmatprep.subr.mxu0 0.0
        %740 = vmatpush1.xpose.msra.mxu0 0.0
        %741 = vmatprep.subr.mxu0 0.0
        %742 = vmatpush1.xpose.msra.mxu0 0.0
        %743 = vmatprep.subr.mxu0 0.0
        %744 = vmatpush1.xpose.msra.mxu0 0.0
        %745 = vmatprep.subr.mxu0 0.0
        %746 = vmatpush1.xpose.msra.mxu0 0.0
        %747 = vmatprep.subr.mxu0 0.0
        %748 = vmatpush1.xpose.msra.mxu0 0.0
        %749 = vmatprep.subr.mxu0 0.0
        %750 = vmatpush1.xpose.msra.mxu0 0.0
        %751 = vmatprep.subr.mxu0 0.0
        %752 = vmatpush1.xpose.msra.mxu0 0.0
        %753 = vmatprep.subr.mxu0 0.0
        %754 = vmatpush1.xpose.msra.mxu0 0.0
        %755 = vmatprep.subr.mxu0 0.0
        %756 = vmatpush1.xpose.msra.mxu0 0.0
        %757 = vmatprep.subr.mxu0 0.0
        %758 = vmatpush1.xpose.msra.mxu0 0.0
        %759 = vmatprep.subr.mxu0 0.0
        %760 = vmatpush1.xpose.msra.mxu0 0.0
        %761 = vmatprep.subr.mxu0 0.0
        %762 = vmatpush1.xpose.msra.mxu0 0.0
        %763 = vmatprep.subr.mxu0 0.0
        %764 = vmatpush1.xpose.msra.mxu0 0.0
        %765 = vmatprep.subr.mxu0 0.0
        %766 = vmatpush1.xpose.msra.mxu0 0.0
        %767 = vmatprep.subr.mxu0 0.0
        %768 = vmatpush1.xpose.msra.mxu0 0.0
        %769 = vmatprep.subr.mxu0 0.0
        %770 = vmatpush1.xpose.msra.mxu0 0.0
        %771 = vmatprep.subr.mxu0 0.0
        %772 = vmatpush1.xpose.msra.mxu0 0.0
        %773 = vmatprep.subr.mxu0 0.0
        %774 = vmatpush1.xpose.msra.mxu0 0.0
        %775 = vmatprep.subr.mxu0 0.0
        %776 = vmatpush1.xpose.msra.mxu0 0.0
        %777 = vmatprep.subr.mxu0 0.0
        %778 = vmatpush1.xpose.msra.mxu0 0.0
        %779 = vmatprep.subr.mxu0 0.0
        %780 = vmatpush1.xpose.msra.mxu0 0.0
        %781 = vmatprep.subr.mxu0 0.0
        %782 = vmatpush1.xpose.msra.mxu0 0.0
        %783 = vmatprep.subr.mxu0 0.0
        %784 = vmatpush1.xpose.msra.mxu0 0.0
        %785 = vmatprep.subr.mxu0 0.0
        %786 = vmatpush1.xpose.msra.mxu0 0.0
        %787 = vmatprep.subr.mxu0 0.0
        %788 = vmatpush1.xpose.msra.mxu0 0.0
        %789 = vmatprep.subr.mxu0 0.0
        %790 = vmatpush1.xpose.msra.mxu0 0.0
        %791 = vmatprep.mubr.f32.mxu0 0.0
        %792 = vmatmul.mubr.f32.gmra.mrb[0].mxu0 %v723
        %v793 = vpop.f32.mrb[0].mxu0
        %v794 = vadd.f32 0.0, %v793
        %v795 = vpop.f32.mrb[0].mxu0
        %796 = vdwg.mxu0
        %v797 = vsel %vm554, %v794, -inf
        %798 = vmax.xlane.f32.xlu0 %v797
        %v799 = vpop.xlane.xlu0 %798
        %v800 = vsub.f32 %v794, %v799
        %v801 = vmul.f32 %v800, 1.442695
        %v802 = vpow.pop %v801
        %v803 = vsel %vm554, %v802, 0.0
        %804 = vadd.xlane.f32.xlu0 %v803
        %v805 = vpop.xlane.xlu0 %804
        %v806 = vrcp.pop %v805
        %v807 = vmul.f32 %v802, %v806
        %s808 = scalar_lea.vmem %s371, 8 [#allocation4]
        %809 = vst.msk [vmem:[%s808] sm:$0xff] %vm554, %v807
        %810 = vrot.lane.b32.xlu0 %v551, 88
        %v811 = vpop.permute.xlu0 %810
        %v814 = vsel %vm554, %v807, 0
        %816 = vmatprep.subr.mxu0 0.0
        %817 = vmatpush1.msra.mxu0 %v811
        %818 = vmatprep.subr.mxu0 0.0
        %819 = vmatpush1.msra.mxu0 0.0
        %820 = vmatprep.subr.mxu0 0.0
        %821 = vmatpush1.msra.mxu0 0.0
        %822 = vmatprep.subr.mxu0 0.0
        %823 = vmatpush1.msra.mxu0 0.0
        %824 = vmatprep.subr.mxu0 0.0
        %825 = vmatpush1.msra.mxu0 0.0
        %826 = vmatprep.subr.mxu0 0.0
        %827 = vmatpush1.msra.mxu0 0.0
        %828 = vmatprep.subr.mxu0 0.0
        %829 = vmatpush1.msra.mxu0 0.0
        %830 = vmatprep.subr.mxu0 0.0
        %831 = vmatpush1.msra.mxu0 0.0
        %832 = vmatprep.subr.mxu0 0.0
        %833 = vmatpush1.msra.mxu0 0.0
        %834 = vmatprep.subr.mxu0 0.0
        %835 = vmatpush1.msra.mxu0 0.0
        %836 = vmatprep.subr.mxu0 0.0
        %837 = vmatpush1.msra.mxu0 0.0
        %838 = vmatprep.subr.mxu0 0.0
        %839 = vmatpush1.msra.mxu0 0.0
        %840 = vmatprep.subr.mxu0 0.0
        %841 = vmatpush1.msra.mxu0 0.0
        %842 = vmatprep.subr.mxu0 0.0
        %843 = vmatpush1.msra.mxu0 0.0
        %844 = vmatprep.subr.mxu0 0.0
        %845 = vmatpush1.msra.mxu0 0.0
        %846 = vmatprep.subr.mxu0 0.0
        %847 = vmatpush1.msra.mxu0 0.0
        %848 = vmatprep.subr.mxu0 0.0
        %849 = vmatpush1.msra.mxu0 0.0
        %850 = vmatprep.subr.mxu0 0.0
        %851 = vmatpush1.msra.mxu0 0.0
        %852 = vmatprep.subr.mxu0 0.0
        %853 = vmatpush1.msra.mxu0 0.0
        %854 = vmatprep.subr.mxu0 0.0
        %855 = vmatpush1.msra.mxu0 0.0
        %856 = vmatprep.subr.mxu0 0.0
        %857 = vmatpush1.msra.mxu0 0.0
        %858 = vmatprep.subr.mxu0 0.0
        %859 = vmatpush1.msra.mxu0 0.0
        %860 = vmatprep.subr.mxu0 0.0
        %861 = vmatpush1.msra.mxu0 0.0
        %862 = vmatprep.subr.mxu0 0.0
        %863 = vmatpush1.msra.mxu0 0.0
        %864 = vmatprep.subr.mxu0 0.0
        %865 = vmatpush1.msra.mxu0 0.0
        %866 = vmatprep.subr.mxu0 0.0
        %867 = vmatpush1.msra.mxu0 0.0
        %868 = vmatprep.subr.mxu0 0.0
        %869 = vmatpush1.msra.mxu0 0.0
        %870 = vmatprep.subr.mxu0 0.0
        %871 = vmatpush1.msra.mxu0 0.0
        %872 = vmatprep.subr.mxu0 0.0
        %873 = vmatpush1.msra.mxu0 0.0
        %874 = vmatprep.subr.mxu0 0.0
        %875 = vmatpush1.msra.mxu0 0.0
        %876 = vmatprep.subr.mxu0 0.0
        %877 = vmatpush1.msra.mxu0 0.0
        %878 = vmatprep.subr.mxu0 0.0
        %879 = vmatpush1.msra.mxu0 0.0
        %880 = vmatprep.mubr.f32.mxu0 0.0
        %881 = vmatmul.mubr.f32.gmra.mrb[0].mxu0 %v814
        %v882 = vpop.f32.mrb[0].mxu0
        %v883 = vadd.f32 0.0, %v882
        %v884 = vpop.f32.mrb[0].mxu0
        %885 = vdwg.mxu0
        %886 = vrot.lane.b32.xlu0 %v467, 112
        %v887 = vpop.permute.xlu0 %886
        %888 = vrot.lane.b32.xlu0 %v551, 112
        %v889 = vpop.permute.xlu0 %888
        %v890 = vsel %vm554, %v887, 0
        %v892 = vsel %vm554, %v889, 0
        %894 = vmatprep.subr.mxu0 0.0
        %895 = vmatpush1.xpose.msra.mxu0 %v892
        %896 = vmatprep.subr.mxu0 0.0
        %897 = vmatpush1.xpose.msra.mxu0 0.0
        %898 = vmatprep.subr.mxu0 0.0
        %899 = vmatpush1.xpose.msra.mxu0 0.0
        %900 = vmatprep.subr.mxu0 0.0
        %901 = vmatpush1.xpose.msra.mxu0 0.0
        %902 = vmatprep.subr.mxu0 0.0
        %903 = vmatpush1.xpose.msra.mxu0 0.0
        %904 = vmatprep.subr.mxu0 0.0
        %905 = vmatpush1.xpose.msra.mxu0 0.0
        %906 = vmatprep.subr.mxu0 0.0
        %907 = vmatpush1.xpose.msra.mxu0 0.0
        %908 = vmatprep.subr.mxu0 0.0
        %909 = vmatpush1.xpose.msra.mxu0 0.0
        %910 = vmatprep.subr.mxu0 0.0
        %911 = vmatpush1.xpose.msra.mxu0 0.0
        %912 = vmatprep.subr.mxu0 0.0
        %913 = vmatpush1.xpose.msra.mxu0 0.0
        %914 = vmatprep.subr.mxu0 0.0
        %915 = vmatpush1.xpose.msra.mxu0 0.0
        %916 = vmatprep.subr.mxu0 0.0
        %917 = vmatpush1.xpose.msra.mxu0 0.0
        %918 = vmatprep.subr.mxu0 0.0
        %919 = vmatpush1.xpose.msra.mxu0 0.0
        %920 = vmatprep.subr.mxu0 0.0
        %921 = vmatpush1.xpose.msra.mxu0 0.0
        %922 = vmatprep.subr.mxu0 0.0
        %923 = vmatpush1.xpose.msra.mxu0 0.0
        %924 = vmatprep.subr.mxu0 0.0
        %925 = vmatpush1.xpose.msra.mxu0 0.0
        %926 = vmatprep.subr.mxu0 0.0
        %927 = vmatpush1.xpose.msra.mxu0 0.0
        %928 = vmatprep.subr.mxu0 0.0
        %929 = vmatpush1.xpose.msra.mxu0 0.0
        %930 = vmatprep.subr.mxu0 0.0
        %931 = vmatpush1.xpose.msra.mxu0 0.0
        %932 = vmatprep.subr.mxu0 0.0
        %933 = vmatpush1.xpose.msra.mxu0 0.0
        %934 = vmatprep.subr.mxu0 0.0
        %935 = vmatpush1.xpose.msra.mxu0 0.0
        %936 = vmatprep.subr.mxu0 0.0
        %937 = vmatpush1.xpose.msra.mxu0 0.0
        %938 = vmatprep.subr.mxu0 0.0
        %939 = vmatpush1.xpose.msra.mxu0 0.0
        %940 = vmatprep.subr.mxu0 0.0
        %941 = vmatpush1.xpose.msra.mxu0 0.0
        %942 = vmatprep.subr.mxu0 0.0
        %943 = vmatpush1.xpose.msra.mxu0 0.0
        %944 = vmatprep.subr.mxu0 0.0
        %945 = vmatpush1.xpose.msra.mxu0 0.0
        %946 = vmatprep.subr.mxu0 0.0
        %947 = vmatpush1.xpose.msra.mxu0 0.0
        %948 = vmatprep.subr.mxu0 0.0
        %949 = vmatpush1.xpose.msra.mxu0 0.0
        %950 = vmatprep.subr.mxu0 0.0
        %951 = vmatpush1.xpose.msra.mxu0 0.0
        %952 = vmatprep.subr.mxu0 0.0
        %953 = vmatpush1.xpose.msra.mxu0 0.0
        %954 = vmatprep.subr.mxu0 0.0
        %955 = vmatpush1.xpose.msra.mxu0 0.0
        %956 = vmatprep.subr.mxu0 0.0
        %957 = vmatpush1.xpose.msra.mxu0 0.0
        %958 = vmatprep.mubr.f32.mxu0 0.0
        %959 = vmatmul.mubr.f32.gmra.mrb[0].mxu0 %v890
        %v960 = vpop.f32.mrb[0].mxu0
        %v961 = vadd.f32 0.0, %v960
        %v962 = vpop.f32.mrb[0].mxu0
        %963 = vdwg.mxu0
        %v964 = vsel %vm554, %v961, -inf
        %965 = vmax.xlane.f32.xlu0 %v964
        %v966 = vpop.xlane.xlu0 %965
        %v967 = vsub.f32 %v961, %v966
        %v968 = vmul.f32 %v967, 1.442695
        %v969 = vpow.pop %v968
        %v970 = vsel %vm554, %v969, 0.0
        %971 = vadd.xlane.f32.xlu0 %v970
        %v972 = vpop.xlane.xlu0 %971
        %v973 = vrcp.pop %v972
        %v974 = vmul.f32 %v969, %v973
        %s975 = scalar_lea.vmem %s371, 16 [#allocation4]
        %976 = vst.msk [vmem:[%s975] sm:$0xff] %vm554, %v974
        %977 = vrot.lane.b32.xlu0 %v551, 80
        %v978 = vpop.permute.xlu0 %977
        %v981 = vsel %vm554, %v974, 0
        %983 = vmatprep.subr.mxu0 0.0
        %984 = vmatpush1.msra.mxu0 %v978
        %985 = vmatprep.subr.mxu0 0.0
        %986 = vmatpush1.msra.mxu0 0.0
        %987 = vmatprep.subr.mxu0 0.0
        %988 = vmatpush1.msra.mxu0 0.0
        %989 = vmatprep.subr.mxu0 0.0
        %990 = vmatpush1.msra.mxu0 0.0
        %991 = vmatprep.subr.mxu0 0.0
        %992 = vmatpush1.msra.mxu0 0.0
        %993 = vmatprep.subr.mxu0 0.0
        %994 = vmatpush1.msra.mxu0 0.0
        %995 = vmatprep.subr.mxu0 0.0
        %996 = vmatpush1.msra.mxu0 0.0
        %997 = vmatprep.subr.mxu0 0.0
        %998 = vmatpush1.msra.mxu0 0.0
        %999 = vmatprep.subr.mxu0 0.0
        %1000 = vmatpush1.msra.mxu0 0.0
        %1001 = vmatprep.subr.mxu0 0.0
        %1002 = vmatpush1.msra.mxu0 0.0
        %1003 = vmatprep.subr.mxu0 0.0
        %1004 = vmatpush1.msra.mxu0 0.0
        %1005 = vmatprep.subr.mxu0 0.0
        %1006 = vmatpush1.msra.mxu0 0.0
        %1007 = vmatprep.subr.mxu0 0.0
        %1008 = vmatpush1.msra.mxu0 0.0
        %1009 = vmatprep.subr.mxu0 0.0
        %1010 = vmatpush1.msra.mxu0 0.0
        %1011 = vmatprep.subr.mxu0 0.0
        %1012 = vmatpush1.msra.mxu0 0.0
        %1013 = vmatprep.subr.mxu0 0.0
        %1014 = vmatpush1.msra.mxu0 0.0
        %1015 = vmatprep.subr.mxu0 0.0
        %1016 = vmatpush1.msra.mxu0 0.0
        %1017 = vmatprep.subr.mxu0 0.0
        %1018 = vmatpush1.msra.mxu0 0.0
        %1019 = vmatprep.subr.mxu0 0.0
        %1020 = vmatpush1.msra.mxu0 0.0
        %1021 = vmatprep.subr.mxu0 0.0
        %1022 = vmatpush1.msra.mxu0 0.0
        %1023 = vmatprep.subr.mxu0 0.0
        %1024 = vmatpush1.msra.mxu0 0.0
        %1025 = vmatprep.subr.mxu0 0.0
        %1026 = vmatpush1.msra.mxu0 0.0
        %1027 = vmatprep.subr.mxu0 0.0
        %1028 = vmatpush1.msra.mxu0 0.0
        %1029 = vmatprep.subr.mxu0 0.0
        %1030 = vmatpush1.msra.mxu0 0.0
        %1031 = vmatprep.subr.mxu0 0.0
        %1032 = vmatpush1.msra.mxu0 0.0
        %1033 = vmatprep.subr.mxu0 0.0
        %1034 = vmatpush1.msra.mxu0 0.0
        %1035 = vmatprep.subr.mxu0 0.0
        %1036 = vmatpush1.msra.mxu0 0.0
        %1037 = vmatprep.subr.mxu0 0.0
        %1038 = vmatpush1.msra.mxu0 0.0
        %1039 = vmatprep.subr.mxu0 0.0
        %1040 = vmatpush1.msra.mxu0 0.0
        %1041 = vmatprep.subr.mxu0 0.0
        %1042 = vmatpush1.msra.mxu0 0.0
        %1043 = vmatprep.subr.mxu0 0.0
        %1044 = vmatpush1.msra.mxu0 0.0
        %1045 = vmatprep.subr.mxu0 0.0
        %1046 = vmatpush1.msra.mxu0 0.0
        %1047 = vmatprep.mubr.f32.mxu0 0.0
        %1048 = vmatmul.mubr.f32.gmra.mrb[0].mxu0 %v981
        %v1049 = vpop.f32.mrb[0].mxu0
        %v1050 = vadd.f32 0.0, %v1049
        %v1051 = vpop.f32.mrb[0].mxu0
        %1052 = vdwg.mxu0
        %1053 = vrot.lane.b32.xlu0 %v467, 104
        %v1054 = vpop.permute.xlu0 %1053
        %1055 = vrot.lane.b32.xlu0 %v551, 104
        %v1056 = vpop.permute.xlu0 %1055
        %v1057 = vsel %vm554, %v1054, 0
        %v1059 = vsel %vm554, %v1056, 0
        %1061 = vmatprep.subr.mxu0 0.0
        %1062 = vmatpush1.xpose.msra.mxu0 %v1059
        %1063 = vmatprep.subr.mxu0 0.0
        %1064 = vmatpush1.xpose.msra.mxu0 0.0
        %1065 = vmatprep.subr.mxu0 0.0
        %1066 = vmatpush1.xpose.msra.mxu0 0.0
        %1067 = vmatprep.subr.mxu0 0.0
        %1068 = vmatpush1.xpose.msra.mxu0 0.0
        %1069 = vmatprep.subr.mxu0 0.0
        %1070 = vmatpush1.xpose.msra.mxu0 0.0
        %1071 = vmatprep.subr.mxu0 0.0
        %1072 = vmatpush1.xpose.msra.mxu0 0.0
        %1073 = vmatprep.subr.mxu0 0.0
        %1074 = vmatpush1.xpose.msra.mxu0 0.0
        %1075 = vmatprep.subr.mxu0 0.0
        %1076 = vmatpush1.xpose.msra.mxu0 0.0
        %1077 = vmatprep.subr.mxu0 0.0
        %1078 = vmatpush1.xpose.msra.mxu0 0.0
        %1079 = vmatprep.subr.mxu0 0.0
        %1080 = vmatpush1.xpose.msra.mxu0 0.0
        %1081 = vmatprep.subr.mxu0 0.0
        %1082 = vmatpush1.xpose.msra.mxu0 0.0
        %1083 = vmatprep.subr.mxu0 0.0
        %1084 = vmatpush1.xpose.msra.mxu0 0.0
        %1085 = vmatprep.subr.mxu0 0.0
        %1086 = vmatpush1.xpose.msra.mxu0 0.0
        %1087 = vmatprep.subr.mxu0 0.0
        %1088 = vmatpush1.xpose.msra.mxu0 0.0
        %1089 = vmatprep.subr.mxu0 0.0
        %1090 = vmatpush1.xpose.msra.mxu0 0.0
        %1091 = vmatprep.subr.mxu0 0.0
        %1092 = vmatpush1.xpose.msra.mxu0 0.0
        %1093 = vmatprep.subr.mxu0 0.0
        %1094 = vmatpush1.xpose.msra.mxu0 0.0
        %1095 = vmatprep.subr.mxu0 0.0
        %1096 = vmatpush1.xpose.msra.mxu0 0.0
        %1097 = vmatprep.subr.mxu0 0.0
        %1098 = vmatpush1.xpose.msra.mxu0 0.0
        %1099 = vmatprep.subr.mxu0 0.0
        %1100 = vmatpush1.xpose.msra.mxu0 0.0
        %1101 = vmatprep.subr.mxu0 0.0
        %1102 = vmatpush1.xpose.msra.mxu0 0.0
        %1103 = vmatprep.subr.mxu0 0.0
        %1104 = vmatpush1.xpose.msra.mxu0 0.0
        %1105 = vmatprep.subr.mxu0 0.0
        %1106 = vmatpush1.xpose.msra.mxu0 0.0
        %1107 = vmatprep.subr.mxu0 0.0
        %1108 = vmatpush1.xpose.msra.mxu0 0.0
        %1109 = vmatprep.subr.mxu0 0.0
        %1110 = vmatpush1.xpose.msra.mxu0 0.0
        %1111 = vmatprep.subr.mxu0 0.0
        %1112 = vmatpush1.xpose.msra.mxu0 0.0
        %1113 = vmatprep.subr.mxu0 0.0
        %1114 = vmatpush1.xpose.msra.mxu0 0.0
        %1115 = vmatprep.subr.mxu0 0.0
        %1116 = vmatpush1.xpose.msra.mxu0 0.0
        %1117 = vmatprep.subr.mxu0 0.0
        %1118 = vmatpush1.xpose.msra.mxu0 0.0
        %1119 = vmatprep.subr.mxu0 0.0
        %1120 = vmatpush1.xpose.msra.mxu0 0.0
        %1121 = vmatprep.subr.mxu0 0.0
        %1122 = vmatpush1.xpose.msra.mxu0 0.0
        %1123 = vmatprep.subr.mxu0 0.0
        %1124 = vmatpush1.xpose.msra.mxu0 0.0
        %1125 = vmatprep.mubr.f32.mxu0 0.0
        %1126 = vmatmul.mubr.f32.gmra.mrb[0].mxu0 %v1057
        %v1127 = vpop.f32.mrb[0].mxu0
        %v1128 = vadd.f32 0.0, %v1127
        %v1129 = vpop.f32.mrb[0].mxu0
        %1130 = vdwg.mxu0
        %v1131 = vsel %vm554, %v1128, -inf
        %1132 = vmax.xlane.f32.xlu0 %v1131
        %v1133 = vpop.xlane.xlu0 %1132
        %v1134 = vsub.f32 %v1128, %v1133
        %v1135 = vmul.f32 %v1134, 1.442695
        %v1136 = vpow.pop %v1135
        %v1137 = vsel %vm554, %v1136, 0.0
        %1138 = vadd.xlane.f32.xlu0 %v1137
        %v1139 = vpop.xlane.xlu0 %1138
        %v1140 = vrcp.pop %v1139
        %v1141 = vmul.f32 %v1136, %v1140
        %s1142 = scalar_lea.vmem %s371, 24 [#allocation4]
        %1143 = vst.msk [vmem:[%s1142] sm:$0xff] %vm554, %v1141
        %1144 = vrot.lane.b32.xlu0 %v551, 72
        %v1145 = vpop.permute.xlu0 %1144
        %v1148 = vsel %vm554, %v1141, 0
        %1150 = vmatprep.subr.mxu0 0.0
        %1151 = vmatpush1.msra.mxu0 %v1145
        %1152 = vmatprep.subr.mxu0 0.0
        %1153 = vmatpush1.msra.mxu0 0.0
        %1154 = vmatprep.subr.mxu0 0.0
        %1155 = vmatpush1.msra.mxu0 0.0
        %1156 = vmatprep.subr.mxu0 0.0
        %1157 = vmatpush1.msra.mxu0 0.0
        %1158 = vmatprep.subr.mxu0 0.0
        %1159 = vmatpush1.msra.mxu0 0.0
        %1160 = vmatprep.subr.mxu0 0.0
        %1161 = vmatpush1.msra.mxu0 0.0
        %1162 = vmatprep.subr.mxu0 0.0
        %1163 = vmatpush1.msra.mxu0 0.0
        %1164 = vmatprep.subr.mxu0 0.0
        %1165 = vmatpush1.msra.mxu0 0.0
        %1166 = vmatprep.subr.mxu0 0.0
        %1167 = vmatpush1.msra.mxu0 0.0
        %1168 = vmatprep.subr.mxu0 0.0
        %1169 = vmatpush1.msra.mxu0 0.0
        %1170 = vmatprep.subr.mxu0 0.0
        %1171 = vmatpush1.msra.mxu0 0.0
        %1172 = vmatprep.subr.mxu0 0.0
        %1173 = vmatpush1.msra.mxu0 0.0
        %1174 = vmatprep.subr.mxu0 0.0
        %1175 = vmatpush1.msra.mxu0 0.0
        %1176 = vmatprep.subr.mxu0 0.0
        %1177 = vmatpush1.msra.mxu0 0.0
        %1178 = vmatprep.subr.mxu0 0.0
        %1179 = vmatpush1.msra.mxu0 0.0
        %1180 = vmatprep.subr.mxu0 0.0
        %1181 = vmatpush1.msra.mxu0 0.0
        %1182 = vmatprep.subr.mxu0 0.0
        %1183 = vmatpush1.msra.mxu0 0.0
        %1184 = vmatprep.subr.mxu0 0.0
        %1185 = vmatpush1.msra.mxu0 0.0
        %1186 = vmatprep.subr.mxu0 0.0
        %1187 = vmatpush1.msra.mxu0 0.0
        %1188 = vmatprep.subr.mxu0 0.0
        %1189 = vmatpush1.msra.mxu0 0.0
        %1190 = vmatprep.subr.mxu0 0.0
        %1191 = vmatpush1.msra.mxu0 0.0
        %1192 = vmatprep.subr.mxu0 0.0
        %1193 = vmatpush1.msra.mxu0 0.0
        %1194 = vmatprep.subr.mxu0 0.0
        %1195 = vmatpush1.msra.mxu0 0.0
        %1196 = vmatprep.subr.mxu0 0.0
        %1197 = vmatpush1.msra.mxu0 0.0
        %1198 = vmatprep.subr.mxu0 0.0
        %1199 = vmatpush1.msra.mxu0 0.0
        %1200 = vmatprep.subr.mxu0 0.0
        %1201 = vmatpush1.msra.mxu0 0.0
        %1202 = vmatprep.subr.mxu0 0.0
        %1203 = vmatpush1.msra.mxu0 0.0
        %1204 = vmatprep.subr.mxu0 0.0
        %1205 = vmatpush1.msra.mxu0 0.0
        %1206 = vmatprep.subr.mxu0 0.0
        %1207 = vmatpush1.msra.mxu0 0.0
        %1208 = vmatprep.subr.mxu0 0.0
        %1209 = vmatpush1.msra.mxu0 0.0
        %1210 = vmatprep.subr.mxu0 0.0
        %1211 = vmatpush1.msra.mxu0 0.0
        %1212 = vmatprep.subr.mxu0 0.0
        %1213 = vmatpush1.msra.mxu0 0.0
        %1214 = vmatprep.mubr.f32.mxu0 0.0
        %1215 = vmatmul.mubr.f32.gmra.mrb[0].mxu0 %v1148
        %v1216 = vpop.f32.mrb[0].mxu0
        %v1217 = vadd.f32 0.0, %v1216
        %v1218 = vpop.f32.mrb[0].mxu0
        %1219 = vdwg.mxu0
        %1221 = vrot.lane.b32.xlu0 %v883, 8
        %v1222 = vpop.permute.xlu0 %1221
        %1225 = vrot.lane.b32.xlu0 %v1050, 16
        %v1226 = vpop.permute.xlu0 %1225
        %1229 = vrot.lane.b32.xlu0 %v1217, 24
        %v1230 = vpop.permute.xlu0 %1229
        %v1232 = vsel %vm554, %v716, %v1222
        %vm1233 = vcmask 130048
        %v1234 = vsel %vm1233, %v1232, %v1226
        %vm1235 = vcmask 195584
        %v1236 = vsel %vm1235, %v1234, %v1230
        %v1237 = vld [vmem:[%s6] sm:$0xff]
        %v1238 = vld [vmem:[%s6 + $0x8] sm:$0xff]
        %v1239 = vld [vmem:[%s6 + $0x10] sm:$0xff]
        %v1240 = vld [vmem:[%s6 + $0x18] sm:$0xff]
        %v1241 = vld [vmem:[%s7] sm:$0x1]
        %v1243 = vlaneseq
        %v1244 = vshrl.u32 %v1243, 7
        %v1245 = vsub.s32 0, %v1244
        %v1246 = vrot.slane %v1241, %v1245
        %v1249 = vsel %vm396, %v1236, 0
        %1251 = vmatprep.subr.mxu0 0.0
        %1252 = vmatpush1.msra.mxu0 %v1237
        %1253 = vmatprep.subr.mxu0 0.0
        %1254 = vmatpush1.msra.mxu0 %v1238
        %1255 = vmatprep.subr.mxu0 0.0
        %1256 = vmatpush1.msra.mxu0 %v1239
        %1257 = vmatprep.subr.mxu0 0.0
        %1258 = vmatpush1.msra.mxu0 %v1240
        %1259 = vmatprep.subr.mxu0 0.0
        %1260 = vmatpush1.msra.mxu0 0.0
        %1261 = vmatprep.subr.mxu0 0.0
        %1262 = vmatpush1.msra.mxu0 0.0
        %1263 = vmatprep.subr.mxu0 0.0
        %1264 = vmatpush1.msra.mxu0 0.0
        %1265 = vmatprep.subr.mxu0 0.0
        %1266 = vmatpush1.msra.mxu0 0.0
        %1267 = vmatprep.subr.mxu0 0.0
        %1268 = vmatpush1.msra.mxu0 0.0
        %1269 = vmatprep.subr.mxu0 0.0
        %1270 = vmatpush1.msra.mxu0 0.0
        %1271 = vmatprep.subr.mxu0 0.0
        %1272 = vmatpush1.msra.mxu0 0.0
        %1273 = vmatprep.subr.mxu0 0.0
        %1274 = vmatpush1.msra.mxu0 0.0
        %1275 = vmatprep.subr.mxu0 0.0
        %1276 = vmatpush1.msra.mxu0 0.0
        %1277 = vmatprep.subr.mxu0 0.0
        %1278 = vmatpush1.msra.mxu0 0.0
        %1279 = vmatprep.subr.mxu0 0.0
        %1280 = vmatpush1.msra.mxu0 0.0
        %1281 = vmatprep.subr.mxu0 0.0
        %1282 = vmatpush1.msra.mxu0 0.0
        %1283 = vmatprep.subr.mxu0 0.0
        %1284 = vmatpush1.msra.mxu0 0.0
        %1285 = vmatprep.subr.mxu0 0.0
        %1286 = vmatpush1.msra.mxu0 0.0
        %1287 = vmatprep.subr.mxu0 0.0
        %1288 = vmatpush1.msra.mxu0 0.0
        %1289 = vmatprep.subr.mxu0 0.0
        %1290 = vmatpush1.msra.mxu0 0.0
        %1291 = vmatprep.subr.mxu0 0.0
        %1292 = vmatpush1.msra.mxu0 0.0
        %1293 = vmatprep.subr.mxu0 0.0
        %1294 = vmatpush1.msra.mxu0 0.0
        %1295 = vmatprep.subr.mxu0 0.0
        %1296 = vmatpush1.msra.mxu0 0.0
        %1297 = vmatprep.subr.mxu0 0.0
        %1298 = vmatpush1.msra.mxu0 0.0
        %1299 = vmatprep.subr.mxu0 0.0
        %1300 = vmatpush1.msra.mxu0 0.0
        %1301 = vmatprep.subr.mxu0 0.0
        %1302 = vmatpush1.msra.mxu0 0.0
        %1303 = vmatprep.subr.mxu0 0.0
        %1304 = vmatpush1.msra.mxu0 0.0
        %1305 = vmatprep.subr.mxu0 0.0
        %1306 = vmatpush1.msra.mxu0 0.0
        %1307 = vmatprep.subr.mxu0 0.0
        %1308 = vmatpush1.msra.mxu0 0.0
        %1309 = vmatprep.subr.mxu0 0.0
        %1310 = vmatpush1.msra.mxu0 0.0
        %1311 = vmatprep.subr.mxu0 0.0
        %1312 = vmatpush1.msra.mxu0 0.0
        %1313 = vmatprep.subr.mxu0 0.0
        %1314 = vmatpush1.msra.mxu0 0.0
        %1315 = vmatprep.mubr.f32.mxu0 0.0
        %1316 = vmatmul.mubr.f32.gmra.mrb[0].mxu0 %v1249
        %v1317 = vpop.f32.mrb[0].mxu0
        %v1318 = vadd.f32 %v1246, %v1317
        %v1319 = vpop.f32.mrb[0].mxu0
        %1320 = vdwg.mxu0
        %1321 = vst.msk [vmem:[%s364] sm:$0xff] %vm396, %v1318
        %s1322 = sand.u32 %s229, 1
        %s1323 = scalar_lea.sflag [#allocation3], %s1322
        %s1324 = sand.u32 %s229, 1
        %s1325 = smul.addr %s1324, 8
        %s1326 = scalar_lea.vmem [#allocation2], %s1325
        %s1327 = sand.u32 %s257, 1
        %s1328 = scalar_lea.sflag [#allocation5], %s1327
        %s1329 = sand.u32 %s257, 1
        %s1330 = smul.addr %s1329, 32
        %s1331 = scalar_lea.vmem [#allocation4], %s1330
        // Predicated region
        $region53: #{multi_head_attention.1} parent=51 // pred_check
          %p1332 = pneg %p239
        $region54: #{multi_head_attention.1} parent=51 // pred_check_branch
          %1334 = sbr.rel (%p1332) target = $region56
        $region55: #{multi_head_attention.1} parent=51 // pred_region
          %s1336 = ssub.s32 128, 128
          %1337 = vsyncadd %s1323, %s1336
          %s1338 = sadd.s32 %s32, %s31
          %s1339 = smul.addr %s1338, 128
          %s1340 = scalar_lea.hbm %s8, %s1339
          %s1342 = sshll.u32 %s1326, 4
          %s1343 = int_to_ptr.vmem [resolvable:$true] %s1342
          %1345 = dma.vmem_to_hbm [thread:$0]  %s1343, 128, %s1340, %s1323
        $region56: #{multi_head_attention.1} parent=51 // pred_fallthru
          _
        // Predicated region
        $region57: #{multi_head_attention.1} parent=51 // pred_check
          %p1346 = pneg %p267
        $region58: #{multi_head_attention.1} parent=51 // pred_check_branch
          %1348 = sbr.rel (%p1346) target = $region60
        $region59: #{multi_head_attention.1} parent=51 // pred_region
          %s1350 = ssub.s32 512, 512
          %1351 = vsyncadd %s1328, %s1350
          %s1352 = smul.addr %s31, 4
          %s1353 = sadd.s32 %s32, %s1352
          %s1354 = smul.addr %s1353, 128
          %s1355 = scalar_lea.hbm %s9, %s1354
          %s1356 = sshll.u32 %s1331, 4
          %s1357 = int_to_ptr.vmem [resolvable:$true] %s1356
          %1362 = dma.vmem_to_hbm [thread:$0]  %s1357, 512, %s1355, %s1328, 128, 128, 8
        $region60: #{multi_head_attention.1} parent=51 // pred_fallthru
          _
      $region52: #{multi_head_attention.1} parent=5 // pred_fallthru
        _
      %p1363 = scmp.le.s32.totalorder 2, %s22
      // Predicated region
      $region61: #{multi_head_attention.1} parent=5 // pred_check
        %p1364 = pneg %p1363
      $region62: #{multi_head_attention.1} parent=5 // pred_check_branch
        %1366 = sbr.rel (%p1364) target = $region64
      $region63: #{multi_head_attention.1} parent=5 // pred_region
        %s1367 = ssub.s32 %s22, 2
        // Predicated region
        $region65: #{multi_head_attention.1} parent=63 // pred_check
          %p1368 = pneg %p245
        $region66: #{multi_head_attention.1} parent=63 // pred_check_branch
          %1370 = sbr.rel (%p1368) target = $region68
        $region67: #{multi_head_attention.1} parent=63 // pred_region
          %s1371 = sand.u32 %s230, 1
          %s1372 = scalar_lea.sflag [#allocation3], %s1371
          %s1373 = sand.u32 %s230, 1
          %s1374 = smul.addr %s1373, 8
          %s1375 = scalar_lea.vmem [#allocation2], %s1374
          %1376 = dma.done %s1372, 128
        $region68: #{multi_head_attention.1} parent=63 // pred_fallthru
          _
        // Predicated region
        $region69: #{multi_head_attention.1} parent=63 // pred_check
          %p1377 = pneg %p273
        $region70: #{multi_head_attention.1} parent=63 // pred_check_branch
          %1379 = sbr.rel (%p1377) target = $region72
        $region71: #{multi_head_attention.1} parent=63 // pred_region
          %s1380 = sand.u32 %s258, 1
          %s1381 = scalar_lea.sflag [#allocation5], %s1380
          %s1382 = sand.u32 %s258, 1
          %s1383 = smul.addr %s1382, 32
          %s1384 = scalar_lea.vmem [#allocation4], %s1383
          %1385 = dma.done %s1381, 512
        $region72: #{multi_head_attention.1} parent=63 // pred_fallthru
          _
      $region64: #{multi_head_attention.1} parent=5 // pred_fallthru
        _
    $region6: #{multi_head_attention.1} parent=1 // loop_footer
      %s26 = sadd.s32 1, %s22
    $region7: #{multi_head_attention.1} parent=1 // loop_footer_branch
      %21 = sbr.rel target = $region3
    $region8: #{multi_head_attention.1} parent=1 // loop_exit
      _
    %1386 = vsyncpa [#allocation3], 1
    %s1387 = scalar_lea.sflag [#allocation3], 1
    %1388 = vsyncpa %s1387, 1
    %1389 = vsyncpa [#allocation5], 1
    %s1390 = scalar_lea.sflag [#allocation5], 1
    %1391 = vsyncpa %s1390, 1

</llo_original>
